<compile_context>
chip_gen: v6e
topology: v6e:2x2x1
jax: 0.10.0
libtpu: 0.0.40
codegen_flags: <defaults>
</compile_context>

<pallas_src>
import functools

import jax
import jax.numpy as jnp
from jax import lax
from jax.experimental import pallas as pl
from jax.experimental.pallas import tpu as pltpu


def _layernorm(x, g, b, eps=1e-5):
    mu = jnp.mean(x, axis=-1, keepdims=True)
    var = jnp.mean((x - mu) ** 2, axis=-1, keepdims=True)
    return (x - mu) * lax.rsqrt(var + eps) * g + b


def _gelu(x):
    # TODO(synk): timm/Swin nn.GELU is the exact erf form; tanh approximation
    # deviates by ~1e-3 but lowers unconditionally on all TPU generations.
    return 0.5 * x * (1.0 + jnp.tanh(0.7978845608028654 * (x + 0.044715 * x * x * x)))


# ---------------------------------------------------------------------------
# One fused kernel per batch element:
#   tokens = PatchEmbed(xp)
#   tokens = tokens + MHSA(LN1(tokens))        (fused QKV, batched heads)
#   tokens = tokens + MLP(LN2(tokens))
#   out    = LN_f(tokens)
# ---------------------------------------------------------------------------
def fused_backbone_kernel(xp_ref, w_pe_ref, b_pe_ref,
                          ln1g_ref, ln1b_ref,
                          wqkv_ref, bqkv_ref, wo_ref, bo_ref,
                          ln2g_ref, ln2b_ref,
                          w1_ref, b1_ref, w2_ref, b2_ref,
                          lnfg_ref, lnfb_ref, o_ref, *, num_heads):
    f32, bf16 = jnp.float32, jnp.bfloat16

    xp = xp_ref[0]                                  # (L, Kp) bf16 patches
    seq_len = xp.shape[0]
    dim = w_pe_ref.shape[1]
    hd = dim // num_heads
    scale = 1.0 / (hd ** 0.5)

    # --- patch embedding (conv-as-matmul), fused into the block kernel ---
    x = jnp.dot(xp, w_pe_ref[...], preferred_element_type=f32) + b_pe_ref[...]

    # --- pre-norm multi-head self-attention, fused QKV projection ---
    h1 = _layernorm(x, ln1g_ref[...], ln1b_ref[...])
    qkv = (jnp.dot(h1.astype(bf16), wqkv_ref[...], preferred_element_type=f32)
           + bqkv_ref[...])                         # (L, 3D)
    q = qkv[:, 0:dim]
    k = qkv[:, dim:2 * dim]
    v = qkv[:, 2 * dim:3 * dim]

    def split_heads(t):                             # (L, D) -> (H, L, hd)
        return jnp.stack(
            [t[:, h * hd:(h + 1) * hd] for h in range(num_heads)], axis=0)

    q3 = split_heads(q).astype(bf16)
    k3 = split_heads(k).astype(bf16)
    v3 = split_heads(v).astype(bf16)

    # batched-over-heads attention (single einsum per phase, f32 accumulation)
    s = jnp.einsum('hqd,hkd->hqk', q3, k3,
                   preferred_element_type=f32) * scale          # (H, L, L)
    s = s - jnp.max(s, axis=-1, keepdims=True)
    p = jnp.exp(s)
    denom = jnp.sum(p, axis=-1, keepdims=True)
    p = p * pl.reciprocal(denom, approx=True)                   # EUP slot

    pv = jnp.einsum('hqk,hkd->hqd', p.astype(bf16), v3,
                    preferred_element_type=f32)                 # (H, L, hd)

    # merge heads once, then a single full-K Wo matmul
    attn = jnp.concatenate([pv[h] for h in range(num_heads)], axis=-1)  # (L, D)
    attn = (jnp.dot(attn.astype(bf16), wo_ref[...], preferred_element_type=f32)
            + bo_ref[...])
    x = x + attn

    # --- pre-norm MLP ---
    h2 = _layernorm(x, ln2g_ref[...], ln2b_ref[...])
    m = (jnp.dot(h2.astype(bf16), w1_ref[...], preferred_element_type=f32)
         + b1_ref[...])
    m = _gelu(m)
    m = (jnp.dot(m.astype(bf16), w2_ref[...], preferred_element_type=f32)
         + b2_ref[...])
    x = x + m

    # --- final LayerNorm fused into the same kernel (forward_features tail) ---
    o_ref[0] = _layernorm(x, lnfg_ref[...], lnfb_ref[...])


def backbone_forward(xp, params, *, num_heads):
    b, seq_len, kp = xp.shape
    dim = params["w_pe"].shape[1]
    mlp_hidden = params["w1"].shape[1]

    def w_spec(shape):
        return pl.BlockSpec(shape, lambda i: (0, 0))

    in_specs = [
        pl.BlockSpec((1, seq_len, kp), lambda i: (i, 0, 0)),    # patches
        w_spec((kp, dim)), w_spec((1, dim)),                    # patch embed
        w_spec((1, dim)), w_spec((1, dim)),                     # ln1 g/b
        w_spec((dim, 3 * dim)), w_spec((1, 3 * dim)),           # fused QKV
        w_spec((dim, dim)), w_spec((1, dim)),                   # wo, bo
        w_spec((1, dim)), w_spec((1, dim)),                     # ln2 g/b
        w_spec((dim, mlp_hidden)), w_spec((1, mlp_hidden)),     # w1, b1
        w_spec((mlp_hidden, dim)), w_spec((1, dim)),            # w2, b2
        w_spec((1, dim)), w_spec((1, dim)),                     # final LN g/b
    ]

    return pl.pallas_call(
        functools.partial(fused_backbone_kernel, num_heads=num_heads),
        out_shape=jax.ShapeDtypeStruct((b, seq_len, dim), jnp.float32),
        grid=(b,),
        in_specs=in_specs,
        out_specs=pl.BlockSpec((1, seq_len, dim), lambda i: (i, 0, 0)),
        compiler_params=pltpu.CompilerParams(
            dimension_semantics=("parallel",)),
    )(
        xp,
        params["w_pe"], params["b_pe"],
        params["ln1_g"], params["ln1_b"],
        params["w_qkv"], params["b_qkv"],
        params["wo"], params["bo"],
        params["ln2_g"], params["ln2_b"],
        params["w1"], params["b1"],
        params["w2"], params["b2"],
        params["lnf_g"], params["lnf_b"],
    )


# ---------------------------------------------------------------------------
# CNN.forward(image) equivalent.  type_='swin' -> no NHWC permute; returns
# (B, L, D) token features.  Patch extraction / padding is plain-JAX glue.
# ---------------------------------------------------------------------------
def cnn_forward(image, params, *, patch, num_heads):
    b, c, h, w = image.shape
    kp_pad = params["w_pe"].shape[0]
    gh, gw = h // patch, w // patch
    seq_len = gh * gw
    kp = c * patch * patch

    # patch extraction: ordering matches PyTorch Conv2d weight (D, C, p, p)
    xp = (image.reshape(b, c, gh, patch, gw, patch)
               .transpose(0, 2, 4, 1, 3, 5)
               .reshape(b, seq_len, kp))
    # zero-pad the contraction dim up to a lane multiple (full MXU tile)
    if kp_pad > kp:
        xp = jnp.pad(xp, ((0, 0), (0, 0), (0, kp_pad - kp)))
    xp = xp.astype(jnp.bfloat16)

    return backbone_forward(xp, params, num_heads=num_heads)


def init_params(key, c, patch, dim, mlp_hidden):
    ks = jax.random.split(key, 8)
    kp = c * patch * patch
    kp_pad = ((kp + 127) // 128) * 128
    bf16, f32 = jnp.bfloat16, jnp.float32

    def w(k, shape):
        return (jax.random.normal(k, shape, f32) * 0.02).astype(bf16)

    # conv weight (D, C, p, p) flattened -> (C*p*p, D), zero-padded K rows
    w_pe = jnp.zeros((kp_pad, dim), bf16).at[:kp, :].set(w(ks[0], (dim, kp)).T)
    wq, wk, wv = w(ks[1], (dim, dim)), w(ks[2], (dim, dim)), w(ks[3], (dim, dim))

    return dict(
        w_pe=w_pe,
        b_pe=jnp.zeros((1, dim), f32),
        ln1_g=jnp.ones((1, dim), f32), ln1_b=jnp.zeros((1, dim), f32),
        w_qkv=jnp.concatenate([wq, wk, wv], axis=1),        # (D, 3D) fused QKV
        b_qkv=jnp.zeros((1, 3 * dim), f32),
        wo=w(ks[4], (dim, dim)), bo=jnp.zeros((1, dim), f32),
        ln2_g=jnp.ones((1, dim), f32), ln2_b=jnp.zeros((1, dim), f32),
        w1=w(ks[5], (dim, mlp_hidden)), b1=jnp.zeros((1, mlp_hidden), f32),
        w2=w(ks[6], (mlp_hidden, dim)), b2=jnp.zeros((1, dim), f32),
        lnf_g=jnp.ones((1, dim), f32), lnf_b=jnp.zeros((1, dim), f32),
    )


if __name__ == "__main__":
    B, C, H, W = 2, 3, 16, 16       # small synthetic NCHW image
    PATCH = 4
    DIM = 128                        # lane-dense feature dim (multiple of 128)
    HEADS = 4
    MLP_HIDDEN = 4 * DIM

    key = jax.random.PRNGKey(0)
    k_img, k_par = jax.random.split(key)
    image = jax.random.normal(k_img, (B, C, H, W), jnp.float32)
    params = init_params(k_par, C, PATCH, DIM, MLP_HIDDEN)

    out = cnn_forward(image, params, patch=PATCH, num_heads=HEADS)
    out = jax.block_until_ready(out)
    assert out.shape == (B, (H // PATCH) * (W // PATCH), DIM)
    assert bool(jnp.all(jnp.isfinite(out)))
    print("KERNEL_OK")
</pallas_src>

<mosaic_0001>
module attributes {stable_mosaic.version = 11 : i64} {
  func.func @fused_backbone_kernel(%arg0: i32, %arg1: memref<1x16x128xbf16, #tpu.memory_space<vmem>>, %arg2: memref<128x128xbf16, #tpu.memory_space<vmem>>, %arg3: memref<1x128xf32, #tpu.memory_space<vmem>>, %arg4: memref<1x128xf32, #tpu.memory_space<vmem>>, %arg5: memref<1x128xf32, #tpu.memory_space<vmem>>, %arg6: memref<128x384xbf16, #tpu.memory_space<vmem>>, %arg7: memref<1x384xf32, #tpu.memory_space<vmem>>, %arg8: memref<128x128xbf16, #tpu.memory_space<vmem>>, %arg9: memref<1x128xf32, #tpu.memory_space<vmem>>, %arg10: memref<1x128xf32, #tpu.memory_space<vmem>>, %arg11: memref<1x128xf32, #tpu.memory_space<vmem>>, %arg12: memref<128x512xbf16, #tpu.memory_space<vmem>>, %arg13: memref<1x512xf32, #tpu.memory_space<vmem>>, %arg14: memref<512x128xbf16, #tpu.memory_space<vmem>>, %arg15: memref<1x128xf32, #tpu.memory_space<vmem>>, %arg16: memref<1x128xf32, #tpu.memory_space<vmem>>, %arg17: memref<1x128xf32, #tpu.memory_space<vmem>>, %arg18: memref<1x16x128xf32, #tpu.memory_space<vmem>>) attributes {dimension_semantics = [#tpu.dimension_semantics<parallel>], iteration_bounds = array<i64: 2>, scalar_prefetch = 0 : i64, scratch_operands = 0 : i64, tpu.core_type = #tpu.core_type<tc>, window_params = [{transform_indices = @transform_0, window_bounds = array<i64: 1, 16, 128>}, {pipeline_mode = #tpu.pipeline_mode<synchronous>, transform_indices = @transform_1, window_bounds = array<i64: 128, 128>}, {pipeline_mode = #tpu.pipeline_mode<synchronous>, transform_indices = @transform_2, window_bounds = array<i64: 1, 128>}, {pipeline_mode = #tpu.pipeline_mode<synchronous>, transform_indices = @transform_3, window_bounds = array<i64: 1, 128>}, {pipeline_mode = #tpu.pipeline_mode<synchronous>, transform_indices = @transform_4, window_bounds = array<i64: 1, 128>}, {pipeline_mode = #tpu.pipeline_mode<synchronous>, transform_indices = @transform_5, window_bounds = array<i64: 128, 384>}, {pipeline_mode = #tpu.pipeline_mode<synchronous>, transform_indices = @transform_6, window_bounds = array<i64: 1, 384>}, {pipeline_mode = #tpu.pipeline_mode<synchronous>, transform_indices = @transform_7, window_bounds = array<i64: 128, 128>}, {pipeline_mode = #tpu.pipeline_mode<synchronous>, transform_indices = @transform_8, window_bounds = array<i64: 1, 128>}, {pipeline_mode = #tpu.pipeline_mode<synchronous>, transform_indices = @transform_9, window_bounds = array<i64: 1, 128>}, {pipeline_mode = #tpu.pipeline_mode<synchronous>, transform_indices = @transform_10, window_bounds = array<i64: 1, 128>}, {pipeline_mode = #tpu.pipeline_mode<synchronous>, transform_indices = @transform_11, window_bounds = array<i64: 128, 512>}, {pipeline_mode = #tpu.pipeline_mode<synchronous>, transform_indices = @transform_12, window_bounds = array<i64: 1, 512>}, {pipeline_mode = #tpu.pipeline_mode<synchronous>, transform_indices = @transform_13, window_bounds = array<i64: 512, 128>}, {pipeline_mode = #tpu.pipeline_mode<synchronous>, transform_indices = @transform_14, window_bounds = array<i64: 1, 128>}, {pipeline_mode = #tpu.pipeline_mode<synchronous>, transform_indices = @transform_15, window_bounds = array<i64: 1, 128>}, {pipeline_mode = #tpu.pipeline_mode<synchronous>, transform_indices = @transform_16, window_bounds = array<i64: 1, 128>}, {transform_indices = @transform_17, window_bounds = array<i64: 1, 16, 128>}]} {
    %c0 = arith.constant 0 : index
    %c0_0 = arith.constant 0 : index
    %c0_1 = arith.constant 0 : index
    %0 = vector.load %arg1[%c0, %c0_0, %c0_1] : memref<1x16x128xbf16, #tpu.memory_space<vmem>>, vector<1x16x128xbf16>
    %1 = vector.shape_cast %0 : vector<1x16x128xbf16> to vector<16x128xbf16>
    %c0_2 = arith.constant 0 : index
    %c0_3 = arith.constant 0 : index
    %2 = vector.load %arg2[%c0_2, %c0_3] : memref<128x128xbf16, #tpu.memory_space<vmem>>, vector<128x128xbf16>
    %cst = arith.constant dense<0.000000e+00> : vector<16x128xf32>
    %3 = tpu.matmul %1, %2, %cst {dimension_numbers = #tpu.dot_dimension_numbers<[1], [0], [0], [1], [0, 0, 1, 1], [], []>} : vector<16x128xbf16>, vector<128x128xbf16>, vector<16x128xf32> -> vector<16x128xf32>
    %c0_4 = arith.constant 0 : index
    %c0_5 = arith.constant 0 : index
    %4 = vector.load %arg3[%c0_4, %c0_5] : memref<1x128xf32, #tpu.memory_space<vmem>>, vector<1x128xf32>
    %5 = vector.broadcast %4 : vector<1x128xf32> to vector<16x128xf32>
    %6 = arith.addf %3, %5 : vector<16x128xf32>
    %c0_6 = arith.constant 0 : index
    %c0_7 = arith.constant 0 : index
    %7 = vector.load %arg4[%c0_6, %c0_7] : memref<1x128xf32, #tpu.memory_space<vmem>>, vector<1x128xf32>
    %c0_8 = arith.constant 0 : index
    %c0_9 = arith.constant 0 : index
    %8 = vector.load %arg5[%c0_8, %c0_9] : memref<1x128xf32, #tpu.memory_space<vmem>>, vector<1x128xf32>
    %cst_10 = arith.constant dense<0.000000e+00> : vector<16xf32>
    %9 = vector.multi_reduction <add>, %6, %cst_10 [1] : vector<16x128xf32> to vector<16xf32>
    %10 = vector.shape_cast %9 : vector<16xf32> to vector<16x1xf32>
    %cst_11 = arith.constant 1.280000e+02 : f32
    %11 = vector.broadcast %cst_11 : f32 to vector<16x1xf32>
    %12 = arith.divf %10, %11 : vector<16x1xf32>
    %13 = vector.broadcast %12 : vector<16x1xf32> to vector<16x128xf32>
    %14 = arith.subf %6, %13 : vector<16x128xf32>
    %15 = arith.mulf %14, %14 : vector<16x128xf32>
    %cst_12 = arith.constant dense<0.000000e+00> : vector<16xf32>
    %16 = vector.multi_reduction <add>, %15, %cst_12 [1] : vector<16x128xf32> to vector<16xf32>
    %17 = vector.shape_cast %16 : vector<16xf32> to vector<16x1xf32>
    %cst_13 = arith.constant 1.280000e+02 : f32
    %18 = vector.broadcast %cst_13 : f32 to vector<16x1xf32>
    %19 = arith.divf %17, %18 : vector<16x1xf32>
    %20 = vector.broadcast %12 : vector<16x1xf32> to vector<16x128xf32>
    %21 = arith.subf %6, %20 : vector<16x128xf32>
    %cst_14 = arith.constant 9.99999974E-6 : f32
    %22 = vector.broadcast %cst_14 : f32 to vector<16x1xf32>
    %23 = arith.addf %19, %22 : vector<16x1xf32>
    %24 = math.rsqrt %23 : vector<16x1xf32>
    %25 = vector.broadcast %24 : vector<16x1xf32> to vector<16x128xf32>
    %26 = arith.mulf %21, %25 : vector<16x128xf32>
    %27 = vector.broadcast %7 : vector<1x128xf32> to vector<16x128xf32>
    %28 = arith.mulf %26, %27 : vector<16x128xf32>
    %29 = vector.broadcast %8 : vector<1x128xf32> to vector<16x128xf32>
    %30 = arith.addf %28, %29 : vector<16x128xf32>
    %31 = arith.truncf %30 : vector<16x128xf32> to vector<16x128xbf16>
    %c0_15 = arith.constant 0 : index
    %c0_16 = arith.constant 0 : index
    %32 = vector.load %arg6[%c0_15, %c0_16] : memref<128x384xbf16, #tpu.memory_space<vmem>>, vector<128x384xbf16>
    %cst_17 = arith.constant dense<0.000000e+00> : vector<16x384xf32>
    %33 = tpu.matmul %31, %32, %cst_17 {dimension_numbers = #tpu.dot_dimension_numbers<[1], [0], [0], [1], [0, 0, 1, 1], [], []>} : vector<16x128xbf16>, vector<128x384xbf16>, vector<16x384xf32> -> vector<16x384xf32>
    %c0_18 = arith.constant 0 : index
    %c0_19 = arith.constant 0 : index
    %34 = vector.load %arg7[%c0_18, %c0_19] : memref<1x384xf32, #tpu.memory_space<vmem>>, vector<1x384xf32>
    %35 = vector.broadcast %34 : vector<1x384xf32> to vector<16x384xf32>
    %36 = arith.addf %33, %35 : vector<16x384xf32>
    %37 = vector.extract_strided_slice %36 {offsets = [0, 0], sizes = [16, 128], strides = [1, 1]} : vector<16x384xf32> to vector<16x128xf32>
    %38 = vector.extract_strided_slice %36 {offsets = [0, 128], sizes = [16, 128], strides = [1, 1]} : vector<16x384xf32> to vector<16x128xf32>
    %39 = vector.extract_strided_slice %36 {offsets = [0, 256], sizes = [16, 128], strides = [1, 1]} : vector<16x384xf32> to vector<16x128xf32>
    %40 = vector.extract_strided_slice %37 {offsets = [0, 0], sizes = [16, 32], strides = [1, 1]} : vector<16x128xf32> to vector<16x32xf32>
    %41 = vector.extract_strided_slice %37 {offsets = [0, 32], sizes = [16, 32], strides = [1, 1]} : vector<16x128xf32> to vector<16x32xf32>
    %42 = vector.extract_strided_slice %37 {offsets = [0, 64], sizes = [16, 32], strides = [1, 1]} : vector<16x128xf32> to vector<16x32xf32>
    %43 = vector.extract_strided_slice %37 {offsets = [0, 96], sizes = [16, 32], strides = [1, 1]} : vector<16x128xf32> to vector<16x32xf32>
    %44 = vector.shape_cast %40 : vector<16x32xf32> to vector<1x16x32xf32>
    %45 = vector.shape_cast %41 : vector<16x32xf32> to vector<1x16x32xf32>
    %46 = vector.shape_cast %42 : vector<16x32xf32> to vector<1x16x32xf32>
    %47 = vector.shape_cast %43 : vector<16x32xf32> to vector<1x16x32xf32>
    %48 = tpu.concatenate %44, %45, %46, %47 in 0 : vector<1x16x32xf32>, vector<1x16x32xf32>, vector<1x16x32xf32>, vector<1x16x32xf32> -> vector<4x16x32xf32>
    %49 = arith.truncf %48 : vector<4x16x32xf32> to vector<4x16x32xbf16>
    %50 = vector.extract_strided_slice %38 {offsets = [0, 0], sizes = [16, 32], strides = [1, 1]} : vector<16x128xf32> to vector<16x32xf32>
    %51 = vector.extract_strided_slice %38 {offsets = [0, 32], sizes = [16, 32], strides = [1, 1]} : vector<16x128xf32> to vector<16x32xf32>
    %52 = vector.extract_strided_slice %38 {offsets = [0, 64], sizes = [16, 32], strides = [1, 1]} : vector<16x128xf32> to vector<16x32xf32>
    %53 = vector.extract_strided_slice %38 {offsets = [0, 96], sizes = [16, 32], strides = [1, 1]} : vector<16x128xf32> to vector<16x32xf32>
    %54 = vector.shape_cast %50 : vector<16x32xf32> to vector<1x16x32xf32>
    %55 = vector.shape_cast %51 : vector<16x32xf32> to vector<1x16x32xf32>
    %56 = vector.shape_cast %52 : vector<16x32xf32> to vector<1x16x32xf32>
    %57 = vector.shape_cast %53 : vector<16x32xf32> to vector<1x16x32xf32>
    %58 = tpu.concatenate %54, %55, %56, %57 in 0 : vector<1x16x32xf32>, vector<1x16x32xf32>, vector<1x16x32xf32>, vector<1x16x32xf32> -> vector<4x16x32xf32>
    %59 = arith.truncf %58 : vector<4x16x32xf32> to vector<4x16x32xbf16>
    %60 = vector.extract_strided_slice %39 {offsets = [0, 0], sizes = [16, 32], strides = [1, 1]} : vector<16x128xf32> to vector<16x32xf32>
    %61 = vector.extract_strided_slice %39 {offsets = [0, 32], sizes = [16, 32], strides = [1, 1]} : vector<16x128xf32> to vector<16x32xf32>
    %62 = vector.extract_strided_slice %39 {offsets = [0, 64], sizes = [16, 32], strides = [1, 1]} : vector<16x128xf32> to vector<16x32xf32>
    %63 = vector.extract_strided_slice %39 {offsets = [0, 96], sizes = [16, 32], strides = [1, 1]} : vector<16x128xf32> to vector<16x32xf32>
    %64 = vector.shape_cast %60 : vector<16x32xf32> to vector<1x16x32xf32>
    %65 = vector.shape_cast %61 : vector<16x32xf32> to vector<1x16x32xf32>
    %66 = vector.shape_cast %62 : vector<16x32xf32> to vector<1x16x32xf32>
    %67 = vector.shape_cast %63 : vector<16x32xf32> to vector<1x16x32xf32>
    %68 = tpu.concatenate %64, %65, %66, %67 in 0 : vector<1x16x32xf32>, vector<1x16x32xf32>, vector<1x16x32xf32>, vector<1x16x32xf32> -> vector<4x16x32xf32>
    %69 = arith.truncf %68 : vector<4x16x32xf32> to vector<4x16x32xbf16>
    "tpu.trace_start"() <{level = 10 : i32, message = "hqd,hkd->hqk"}> : () -> ()
    %cst_20 = arith.constant dense<0.000000e+00> : vector<4x16x16xf32>
    %70 = tpu.matmul %49, %59, %cst_20 {dimension_numbers = #tpu.dot_dimension_numbers<[2], [2], [1], [1], [0, 0, 0, 1, 1, 1], [0], [0]>} : vector<4x16x32xbf16>, vector<4x16x32xbf16>, vector<4x16x16xf32> -> vector<4x16x16xf32>
    "tpu.trace_stop"() : () -> ()
    %cst_21 = arith.constant 0.176776692 : f32
    %71 = vector.broadcast %cst_21 : f32 to vector<4x16x16xf32>
    %72 = arith.mulf %70, %71 : vector<4x16x16xf32>
    %cst_22 = arith.constant dense<0xFF800000> : vector<4x16xf32>
    %73 = vector.multi_reduction <maximumf>, %72, %cst_22 [2] : vector<4x16x16xf32> to vector<4x16xf32>
    %74 = vector.shape_cast %73 : vector<4x16xf32> to vector<4x16x1xf32>
    %75 = vector.broadcast %74 : vector<4x16x1xf32> to vector<4x16x16xf32>
    %76 = arith.subf %72, %75 : vector<4x16x16xf32>
    %77 = math.exp %76 : vector<4x16x16xf32>
    %cst_23 = arith.constant dense<0.000000e+00> : vector<4x16xf32>
    %78 = vector.multi_reduction <add>, %77, %cst_23 [2] : vector<4x16x16xf32> to vector<4x16xf32>
    %79 = vector.shape_cast %78 : vector<4x16xf32> to vector<4x16x1xf32>
    %80 = tpu.reciprocal %79 {approx = true} : vector<4x16x1xf32> -> vector<4x16x1xf32>
    %81 = vector.broadcast %80 : vector<4x16x1xf32> to vector<4x16x16xf32>
    %82 = arith.mulf %77, %81 : vector<4x16x16xf32>
    %83 = arith.truncf %82 : vector<4x16x16xf32> to vector<4x16x16xbf16>
    "tpu.trace_start"() <{level = 10 : i32, message = "hqk,hkd->hqd"}> : () -> ()
    %cst_24 = arith.constant dense<0.000000e+00> : vector<4x16x32xf32>
    %84 = tpu.matmul %83, %69, %cst_24 {dimension_numbers = #tpu.dot_dimension_numbers<[2], [1], [1], [2], [0, 0, 0, 1, 1, 2], [0], [0]>} : vector<4x16x16xbf16>, vector<4x16x32xbf16>, vector<4x16x32xf32> -> vector<4x16x32xf32>
    "tpu.trace_stop"() : () -> ()
    %85 = vector.extract_strided_slice %84 {offsets = [0, 0, 0], sizes = [1, 16, 32], strides = [1, 1, 1]} : vector<4x16x32xf32> to vector<1x16x32xf32>
    %86 = vector.shape_cast %85 : vector<1x16x32xf32> to vector<16x32xf32>
    %87 = vector.extract_strided_slice %84 {offsets = [1, 0, 0], sizes = [1, 16, 32], strides = [1, 1, 1]} : vector<4x16x32xf32> to vector<1x16x32xf32>
    %88 = vector.shape_cast %87 : vector<1x16x32xf32> to vector<16x32xf32>
    %89 = vector.extract_strided_slice %84 {offsets = [2, 0, 0], sizes = [1, 16, 32], strides = [1, 1, 1]} : vector<4x16x32xf32> to vector<1x16x32xf32>
    %90 = vector.shape_cast %89 : vector<1x16x32xf32> to vector<16x32xf32>
    %91 = vector.extract_strided_slice %84 {offsets = [3, 0, 0], sizes = [1, 16, 32], strides = [1, 1, 1]} : vector<4x16x32xf32> to vector<1x16x32xf32>
    %92 = vector.shape_cast %91 : vector<1x16x32xf32> to vector<16x32xf32>
    %93 = tpu.concatenate %86, %88, %90, %92 in 1 : vector<16x32xf32>, vector<16x32xf32>, vector<16x32xf32>, vector<16x32xf32> -> vector<16x128xf32>
    %94 = arith.truncf %93 : vector<16x128xf32> to vector<16x128xbf16>
    %c0_25 = arith.constant 0 : index
    %c0_26 = arith.constant 0 : index
    %95 = vector.load %arg8[%c0_25, %c0_26] : memref<128x128xbf16, #tpu.memory_space<vmem>>, vector<128x128xbf16>
    %cst_27 = arith.constant dense<0.000000e+00> : vector<16x128xf32>
    %96 = tpu.matmul %94, %95, %cst_27 {dimension_numbers = #tpu.dot_dimension_numbers<[1], [0], [0], [1], [0, 0, 1, 1], [], []>} : vector<16x128xbf16>, vector<128x128xbf16>, vector<16x128xf32> -> vector<16x128xf32>
    %c0_28 = arith.constant 0 : index
    %c0_29 = arith.constant 0 : index
    %97 = vector.load %arg9[%c0_28, %c0_29] : memref<1x128xf32, #tpu.memory_space<vmem>>, vector<1x128xf32>
    %98 = vector.broadcast %97 : vector<1x128xf32> to vector<16x128xf32>
    %99 = arith.addf %96, %98 : vector<16x128xf32>
    %100 = arith.addf %6, %99 : vector<16x128xf32>
    %c0_30 = arith.constant 0 : index
    %c0_31 = arith.constant 0 : index
    %101 = vector.load %arg10[%c0_30, %c0_31] : memref<1x128xf32, #tpu.memory_space<vmem>>, vector<1x128xf32>
    %c0_32 = arith.constant 0 : index
    %c0_33 = arith.constant 0 : index
    %102 = vector.load %arg11[%c0_32, %c0_33] : memref<1x128xf32, #tpu.memory_space<vmem>>, vector<1x128xf32>
    %cst_34 = arith.constant dense<0.000000e+00> : vector<16xf32>
    %103 = vector.multi_reduction <add>, %100, %cst_34 [1] : vector<16x128xf32> to vector<16xf32>
    %104 = vector.shape_cast %103 : vector<16xf32> to vector<16x1xf32>
    %cst_35 = arith.constant 1.280000e+02 : f32
    %105 = vector.broadcast %cst_35 : f32 to vector<16x1xf32>
    %106 = arith.divf %104, %105 : vector<16x1xf32>
    %107 = vector.broadcast %106 : vector<16x1xf32> to vector<16x128xf32>
    %108 = arith.subf %100, %107 : vector<16x128xf32>
    %109 = arith.mulf %108, %108 : vector<16x128xf32>
    %cst_36 = arith.constant dense<0.000000e+00> : vector<16xf32>
    %110 = vector.multi_reduction <add>, %109, %cst_36 [1] : vector<16x128xf32> to vector<16xf32>
    %111 = vector.shape_cast %110 : vector<16xf32> to vector<16x1xf32>
    %cst_37 = arith.constant 1.280000e+02 : f32
    %112 = vector.broadcast %cst_37 : f32 to vector<16x1xf32>
    %113 = arith.divf %111, %112 : vector<16x1xf32>
    %114 = vector.broadcast %106 : vector<16x1xf32> to vector<16x128xf32>
    %115 = arith.subf %100, %114 : vector<16x128xf32>
    %cst_38 = arith.constant 9.99999974E-6 : f32
    %116 = vector.broadcast %cst_38 : f32 to vector<16x1xf32>
    %117 = arith.addf %113, %116 : vector<16x1xf32>
    %118 = math.rsqrt %117 : vector<16x1xf32>
    %119 = vector.broadcast %118 : vector<16x1xf32> to vector<16x128xf32>
    %120 = arith.mulf %115, %119 : vector<16x128xf32>
    %121 = vector.broadcast %101 : vector<1x128xf32> to vector<16x128xf32>
    %122 = arith.mulf %120, %121 : vector<16x128xf32>
    %123 = vector.broadcast %102 : vector<1x128xf32> to vector<16x128xf32>
    %124 = arith.addf %122, %123 : vector<16x128xf32>
    %125 = arith.truncf %124 : vector<16x128xf32> to vector<16x128xbf16>
    %c0_39 = arith.constant 0 : index
    %c0_40 = arith.constant 0 : index
    %126 = vector.load %arg12[%c0_39, %c0_40] : memref<128x512xbf16, #tpu.memory_space<vmem>>, vector<128x512xbf16>
    %cst_41 = arith.constant dense<0.000000e+00> : vector<16x512xf32>
    %127 = tpu.matmul %125, %126, %cst_41 {dimension_numbers = #tpu.dot_dimension_numbers<[1], [0], [0], [1], [0, 0, 1, 1], [], []>} : vector<16x128xbf16>, vector<128x512xbf16>, vector<16x512xf32> -> vector<16x512xf32>
    %c0_42 = arith.constant 0 : index
    %c0_43 = arith.constant 0 : index
    %128 = vector.load %arg13[%c0_42, %c0_43] : memref<1x512xf32, #tpu.memory_space<vmem>>, vector<1x512xf32>
    %129 = vector.broadcast %128 : vector<1x512xf32> to vector<16x512xf32>
    %130 = arith.addf %127, %129 : vector<16x512xf32>
    %cst_44 = arith.constant 5.000000e-01 : f32
    %131 = vector.broadcast %cst_44 : f32 to vector<16x512xf32>
    %132 = arith.mulf %131, %130 : vector<16x512xf32>
    %cst_45 = arith.constant 4.471500e-02 : f32
    %133 = vector.broadcast %cst_45 : f32 to vector<16x512xf32>
    %134 = arith.mulf %133, %130 : vector<16x512xf32>
    %135 = arith.mulf %134, %130 : vector<16x512xf32>
    %136 = arith.mulf %135, %130 : vector<16x512xf32>
    %137 = arith.addf %130, %136 : vector<16x512xf32>
    %cst_46 = arith.constant 0.797884583 : f32
    %138 = vector.broadcast %cst_46 : f32 to vector<16x512xf32>
    %139 = arith.mulf %138, %137 : vector<16x512xf32>
    %140 = math.tanh %139 : vector<16x512xf32>
    %cst_47 = arith.constant 1.000000e+00 : f32
    %141 = vector.broadcast %cst_47 : f32 to vector<16x512xf32>
    %142 = arith.addf %141, %140 : vector<16x512xf32>
    %143 = arith.mulf %132, %142 : vector<16x512xf32>
    %144 = arith.truncf %143 : vector<16x512xf32> to vector<16x512xbf16>
    %c0_48 = arith.constant 0 : index
    %c0_49 = arith.constant 0 : index
    %145 = vector.load %arg14[%c0_48, %c0_49] : memref<512x128xbf16, #tpu.memory_space<vmem>>, vector<512x128xbf16>
    %cst_50 = arith.constant dense<0.000000e+00> : vector<16x128xf32>
    %146 = tpu.matmul %144, %145, %cst_50 {dimension_numbers = #tpu.dot_dimension_numbers<[1], [0], [0], [1], [0, 0, 1, 1], [], []>} : vector<16x512xbf16>, vector<512x128xbf16>, vector<16x128xf32> -> vector<16x128xf32>
    %c0_51 = arith.constant 0 : index
    %c0_52 = arith.constant 0 : index
    %147 = vector.load %arg15[%c0_51, %c0_52] : memref<1x128xf32, #tpu.memory_space<vmem>>, vector<1x128xf32>
    %148 = vector.broadcast %147 : vector<1x128xf32> to vector<16x128xf32>
    %149 = arith.addf %146, %148 : vector<16x128xf32>
    %150 = arith.addf %100, %149 : vector<16x128xf32>
    %c0_53 = arith.constant 0 : index
    %c0_54 = arith.constant 0 : index
    %151 = vector.load %arg16[%c0_53, %c0_54] : memref<1x128xf32, #tpu.memory_space<vmem>>, vector<1x128xf32>
    %c0_55 = arith.constant 0 : index
    %c0_56 = arith.constant 0 : index
    %152 = vector.load %arg17[%c0_55, %c0_56] : memref<1x128xf32, #tpu.memory_space<vmem>>, vector<1x128xf32>
    %cst_57 = arith.constant dense<0.000000e+00> : vector<16xf32>
    %153 = vector.multi_reduction <add>, %150, %cst_57 [1] : vector<16x128xf32> to vector<16xf32>
    %154 = vector.shape_cast %153 : vector<16xf32> to vector<16x1xf32>
    %cst_58 = arith.constant 1.280000e+02 : f32
    %155 = vector.broadcast %cst_58 : f32 to vector<16x1xf32>
    %156 = arith.divf %154, %155 : vector<16x1xf32>
    %157 = vector.broadcast %156 : vector<16x1xf32> to vector<16x128xf32>
    %158 = arith.subf %150, %157 : vector<16x128xf32>
    %159 = arith.mulf %158, %158 : vector<16x128xf32>
    %cst_59 = arith.constant dense<0.000000e+00> : vector<16xf32>
    %160 = vector.multi_reduction <add>, %159, %cst_59 [1] : vector<16x128xf32> to vector<16xf32>
    %161 = vector.shape_cast %160 : vector<16xf32> to vector<16x1xf32>
    %cst_60 = arith.constant 1.280000e+02 : f32
    %162 = vector.broadcast %cst_60 : f32 to vector<16x1xf32>
    %163 = arith.divf %161, %162 : vector<16x1xf32>
    %164 = vector.broadcast %156 : vector<16x1xf32> to vector<16x128xf32>
    %165 = arith.subf %150, %164 : vector<16x128xf32>
    %cst_61 = arith.constant 9.99999974E-6 : f32
    %166 = vector.broadcast %cst_61 : f32 to vector<16x1xf32>
    %167 = arith.addf %163, %166 : vector<16x1xf32>
    %168 = math.rsqrt %167 : vector<16x1xf32>
    %169 = vector.broadcast %168 : vector<16x1xf32> to vector<16x128xf32>
    %170 = arith.mulf %165, %169 : vector<16x128xf32>
    %171 = vector.broadcast %151 : vector<1x128xf32> to vector<16x128xf32>
    %172 = arith.mulf %170, %171 : vector<16x128xf32>
    %173 = vector.broadcast %152 : vector<1x128xf32> to vector<16x128xf32>
    %174 = arith.addf %172, %173 : vector<16x128xf32>
    %c0_62 = arith.constant 0 : index
    %c0_63 = arith.constant 0 : index
    %c0_64 = arith.constant 0 : index
    %175 = vector.load %arg18[%c0_62, %c0_63, %c0_64] : memref<1x16x128xf32, #tpu.memory_space<vmem>>, vector<1x16x128xf32>
    %176 = vector.shape_cast %175 : vector<1x16x128xf32> to vector<16x128xf32>
    %177 = vector.shape_cast %174 : vector<16x128xf32> to vector<1x16x128xf32>
    tpu.vector_store %arg18[%c0_62, %c0_63, %c0_64], %177 {strides = array<i32>} : memref<1x16x128xf32, #tpu.memory_space<vmem>>, vector<1x16x128xf32>,
    return
  }
  func.func @transform_0(%arg0: i32) -> (i32, i32, i32) {
    %c0_i32 = arith.constant 0 : i32
    %c0_i32_0 = arith.constant 0 : i32
    %c0_i32_1 = arith.constant 0 : i32
    return %arg0, %c0_i32, %c0_i32_0 : i32, i32, i32
  }
  func.func @transform_1(%arg0: i32) -> (i32, i32) {
    %c0_i32 = arith.constant 0 : i32
    %c0_i32_0 = arith.constant 0 : i32
    %c0_i32_1 = arith.constant 0 : i32
    return %c0_i32, %c0_i32_0 : i32, i32
  }
  func.func @transform_2(%arg0: i32) -> (i32, i32) {
    %c0_i32 = arith.constant 0 : i32
    %c0_i32_0 = arith.constant 0 : i32
    %c0_i32_1 = arith.constant 0 : i32
    return %c0_i32, %c0_i32_0 : i32, i32
  }
  func.func @transform_3(%arg0: i32) -> (i32, i32) {
    %c0_i32 = arith.constant 0 : i32
    %c0_i32_0 = arith.constant 0 : i32
    %c0_i32_1 = arith.constant 0 : i32
    return %c0_i32, %c0_i32_0 : i32, i32
  }
  func.func @transform_4(%arg0: i32) -> (i32, i32) {
    %c0_i32 = arith.constant 0 : i32
    %c0_i32_0 = arith.constant 0 : i32
    %c0_i32_1 = arith.constant 0 : i32
    return %c0_i32, %c0_i32_0 : i32, i32
  }
  func.func @transform_5(%arg0: i32) -> (i32, i32) {
    %c0_i32 = arith.constant 0 : i32
    %c0_i32_0 = arith.constant 0 : i32
    %c0_i32_1 = arith.constant 0 : i32
    return %c0_i32, %c0_i32_0 : i32, i32
  }
  func.func @transform_6(%arg0: i32) -> (i32, i32) {
    %c0_i32 = arith.constant 0 : i32
    %c0_i32_0 = arith.constant 0 : i32
    %c0_i32_1 = arith.constant 0 : i32
    return %c0_i32, %c0_i32_0 : i32, i32
  }
  func.func @transform_7(%arg0: i32) -> (i32, i32) {
    %c0_i32 = arith.constant 0 : i32
    %c0_i32_0 = arith.constant 0 : i32
    %c0_i32_1 = arith.constant 0 : i32
    return %c0_i32, %c0_i32_0 : i32, i32
  }
  func.func @transform_8(%arg0: i32) -> (i32, i32) {
    %c0_i32 = arith.constant 0 : i32
    %c0_i32_0 = arith.constant 0 : i32
    %c0_i32_1 = arith.constant 0 : i32
    return %c0_i32, %c0_i32_0 : i32, i32
  }
  func.func @transform_9(%arg0: i32) -> (i32, i32) {
    %c0_i32 = arith.constant 0 : i32
    %c0_i32_0 = arith.constant 0 : i32
    %c0_i32_1 = arith.constant 0 : i32
    return %c0_i32, %c0_i32_0 : i32, i32
  }
  func.func @transform_10(%arg0: i32) -> (i32, i32) {
    %c0_i32 = arith.constant 0 : i32
    %c0_i32_0 = arith.constant 0 : i32
    %c0_i32_1 = arith.constant 0 : i32
    return %c0_i32, %c0_i32_0 : i32, i32
  }
  func.func @transform_11(%arg0: i32) -> (i32, i32) {
    %c0_i32 = arith.constant 0 : i32
    %c0_i32_0 = arith.constant 0 : i32
    %c0_i32_1 = arith.constant 0 : i32
    return %c0_i32, %c0_i32_0 : i32, i32
  }
  func.func @transform_12(%arg0: i32) -> (i32, i32) {
    %c0_i32 = arith.constant 0 : i32
    %c0_i32_0 = arith.constant 0 : i32
    %c0_i32_1 = arith.constant 0 : i32
    return %c0_i32, %c0_i32_0 : i32, i32
  }
  func.func @transform_13(%arg0: i32) -> (i32, i32) {
    %c0_i32 = arith.constant 0 : i32
    %c0_i32_0 = arith.constant 0 : i32
    %c0_i32_1 = arith.constant 0 : i32
    return %c0_i32, %c0_i32_0 : i32, i32
  }
  func.func @transform_14(%arg0: i32) -> (i32, i32) {
    %c0_i32 = arith.constant 0 : i32
    %c0_i32_0 = arith.constant 0 : i32
    %c0_i32_1 = arith.constant 0 : i32
    return %c0_i32, %c0_i32_0 : i32, i32
  }
  func.func @transform_15(%arg0: i32) -> (i32, i32) {
    %c0_i32 = arith.constant 0 : i32
    %c0_i32_0 = arith.constant 0 : i32
    %c0_i32_1 = arith.constant 0 : i32
    return %c0_i32, %c0_i32_0 : i32, i32
  }
  func.func @transform_16(%arg0: i32) -> (i32, i32) {
    %c0_i32 = arith.constant 0 : i32
    %c0_i32_0 = arith.constant 0 : i32
    %c0_i32_1 = arith.constant 0 : i32
    return %c0_i32, %c0_i32_0 : i32, i32
  }
  func.func @transform_17(%arg0: i32) -> (i32, i32, i32) {
    %c0_i32 = arith.constant 0 : i32
    %c0_i32_0 = arith.constant 0 : i32
    %c0_i32_1 = arith.constant 0 : i32
    return %arg0, %c0_i32, %c0_i32_0 : i32, i32, i32
  }
}

</mosaic_0001>

<llo_original>
// kernel: tpu_custom_call.1
$region0: #{tpu_custom_call.1}
  #allocation0 [shape = 'u32[]', space=smem, size = 0x4, offset = 0x4, fixed_abs, tag = 'smem constant byte address 0x4 - core index']
  #allocation1 [shape = 'u32[144,128]{1,0:T(1,128)}', space=vmem, size = 0x12000, scoped, tag = 'internal scratch']
  %s0 = inlined_call_operand.hbm [shape: bf16[2,16,128], index: 0, kind: input, shape index: {}]
  %s1 = inlined_call_operand.hbm [shape: bf16[128,128], index: 1, kind: input, shape index: {}]
  %s2 = inlined_call_operand.hbm [shape: f32[1,128], index: 2, kind: input, shape index: {}]
  %s3 = inlined_call_operand.hbm [shape: f32[1,128], index: 3, kind: input, shape index: {}]
  %s4 = inlined_call_operand.hbm [shape: f32[1,128], index: 4, kind: input, shape index: {}]
  %s5 = inlined_call_operand.hbm [shape: bf16[128,384], index: 5, kind: input, shape index: {}]
  %s6 = inlined_call_operand.vmem [shape: f32[1,384], index: 6, kind: input, shape index: {}]
  %s7 = inlined_call_operand.hbm [shape: bf16[128,128], index: 7, kind: input, shape index: {}]
  %s8 = inlined_call_operand.vmem [shape: f32[1,128], index: 8, kind: input, shape index: {}]
  %s9 = inlined_call_operand.vmem [shape: f32[1,128], index: 9, kind: input, shape index: {}]
  %s10 = inlined_call_operand.vmem [shape: f32[1,128], index: 10, kind: input, shape index: {}]
  %s11 = inlined_call_operand.hbm [shape: bf16[128,512], index: 11, kind: input, shape index: {}]
  %s12 = inlined_call_operand.vmem [shape: f32[1,512], index: 12, kind: input, shape index: {}]
  %s13 = inlined_call_operand.hbm [shape: bf16[512,128], index: 13, kind: input, shape index: {}]
  %s14 = inlined_call_operand.vmem [shape: f32[1,128], index: 14, kind: input, shape index: {}]
  %s15 = inlined_call_operand.vmem [shape: f32[1,128], index: 15, kind: input, shape index: {}]
  %s16 = inlined_call_operand.vmem [shape: f32[1,128], index: 16, kind: input, shape index: {}]
  %s17 = inlined_call_operand.hbm [shape: f32[2,16,128], index: 17, kind: output, shape index: {}]
  %s18 = sld [smem:[#allocation0]]
  $region137: #{tpu_custom_call.1} parent=0
    _
  %s20 = ssub.s32 1, %s18
  %s21 = scalar_select 0, %s20, %s18
  $region1: #{tpu_custom_call.1} parent=0
    #allocation2 [shape = 'u8[8192]{0}', space=vmem, size = 0x2000, scoped, tag = 'input window, operand 0']
    #allocation3 [shape = 's32[2]{0}', space=sflag, size = 0x8, scoped, tag = 'scoped memory for tpu_custom_call.1']
    #allocation4 [shape = 's32[2]{0}', space=sflag, size = 0x8, scoped, tag = 'scoped memory for tpu_custom_call.1']
    #allocation5 [shape = 'u8[32768]{0}', space=vmem, size = 0x8000, scoped, tag = 'input window, operand 1, single buffered']
    #allocation6 [shape = 's32[1]{0}', space=sflag, size = 0x4, scoped, tag = 'scoped memory for tpu_custom_call.1']
    #allocation7 [shape = 'u8[512]{0}', space=vmem, size = 0x400, scoped, tag = 'input window, operand 2, single buffered']
    #allocation8 [shape = 'u8[512]{0}', space=vmem, size = 0x400, scoped, tag = 'input window, operand 3, single buffered']
    #allocation9 [shape = 's32[1]{0}', space=sflag, size = 0x4, scoped, tag = 'scoped memory for tpu_custom_call.1']
    #allocation10 [shape = 'u8[512]{0}', space=vmem, size = 0x400, scoped, tag = 'input window, operand 4, single buffered']
    #allocation11 [shape = 'u8[98304]{0}', space=vmem, size = 0x18000, scoped, tag = 'input window, operand 5, single buffered']
    #allocation12 [shape = 's32[1]{0}', space=sflag, size = 0x4, scoped, tag = 'scoped memory for tpu_custom_call.1']
    #allocation13 [shape = 'u8[32768]{0}', space=vmem, size = 0x8000, scoped, tag = 'input window, operand 7, single buffered']
    #allocation14 [shape = 'u8[131072]{0}', space=vmem, size = 0x20000, scoped, tag = 'input window, operand 11, single buffered']
    #allocation15 [shape = 's32[1]{0}', space=sflag, size = 0x4, scoped, tag = 'scoped memory for tpu_custom_call.1']
    #allocation16 [shape = 'u8[131072]{0}', space=vmem, size = 0x20000, scoped, tag = 'input window, operand 13, single buffered']
    #allocation17 [shape = 'u8[16384]{0}', space=vmem, size = 0x4000, scoped, tag = 'output window, operand 0']
    %22 = vsyncpa [#allocation3], 0
    %s23 = scalar_lea.sflag [#allocation3], 1
    %24 = vsyncpa %s23, 0
    %25 = vsyncpa [#allocation6], 0
    %26 = vsyncpa [#allocation9], 0
    %27 = vsyncpa [#allocation12], 0
    %28 = vsyncpa [#allocation15], 0
    %29 = vsyncpa [#allocation4], 0
    %s30 = scalar_lea.sflag [#allocation4], 1
    %31 = vsyncpa %s30, 0
    loop: start=0, step=1, limit=4
    $region2: #{tpu_custom_call.1} parent=1 // loop_pre_header
      _
    $region3: #{tpu_custom_call.1} parent=1 // loop_header
      %s33 = sphi 0, %s37
      %p34 = scmp.ge.s32.totalorder %s33, 4
      %s43 = sphi 0, %s45
      %s46 = sphi 0, %s43
      %s47 = sphi 0, %s46
      %s63 = sphi 0, %s47
      %s67 = sphi 0, %s67
      %s69 = sphi 0, %s67
      %s70 = sphi 0, %s69
      %s84 = sphi 0, %s70
      %s88 = sphi 0, %s88
      %s90 = sphi 0, %s88
      %s91 = sphi 0, %s90
      %s105 = sphi 0, %s91
      %s109 = sphi 0, %s109
      %s111 = sphi 0, %s109
      %s112 = sphi 0, %s111
      %s126 = sphi 0, %s112
      %s130 = sphi 0, %s130
      %s132 = sphi 0, %s130
      %s133 = sphi 0, %s132
      %s147 = sphi 0, %s133
      %s151 = sphi 0, %s151
      %s153 = sphi 0, %s151
      %s154 = sphi 0, %s153
      %s168 = sphi 0, %s154
      %s172 = sphi 0, %s172
      %s174 = sphi 0, %s172
      %s175 = sphi 0, %s174
      %s189 = sphi 0, %s175
      %s193 = sphi 0, %s193
      %s195 = sphi 0, %s193
      %s196 = sphi 0, %s195
      %s210 = sphi 0, %s196
      %s214 = sphi 0, %s214
      %s216 = sphi 0, %s214
      %s217 = sphi 0, %s216
      %s231 = sphi 0, %s217
      %s235 = sphi 0, %s235
      %s237 = sphi 0, %s235
      %s238 = sphi 0, %s237
      %s252 = sphi 0, %s238
      %s256 = sphi 0, %s256
      %s258 = sphi 0, %s256
      %s259 = sphi 0, %s258
      %s273 = sphi 0, %s259
      %s277 = sphi 0, %s277
      %s279 = sphi 0, %s277
      %s280 = sphi 0, %s279
      %s294 = sphi 0, %s280
      %s298 = sphi 0, %s298
      %s300 = sphi 0, %s298
      %s301 = sphi 0, %s300
      %s315 = sphi 0, %s301
      %s319 = sphi 0, %s319
      %s321 = sphi 0, %s319
      %s322 = sphi 0, %s321
      %s336 = sphi 0, %s322
      %s340 = sphi 0, %s340
      %s342 = sphi 0, %s340
      %s343 = sphi 0, %s342
      %s357 = sphi 0, %s343
      %s361 = sphi 0, %s361
      %s363 = sphi 0, %s361
      %s364 = sphi 0, %s363
      %s378 = sphi 0, %s364
      %s382 = sphi 0, %s382
      %s384 = sphi 0, %s382
      %s385 = sphi 0, %s384
      %s399 = sphi 0, %s385
      %s405 = sphi 0, %s407
      %s408 = sphi 0, %s405
      %s409 = sphi 0, %s408
      %s425 = sphi 0, %s409
    $region4: #{tpu_custom_call.1} parent=1 // loop_header_branch
      %36 = sbr.rel (%p34) target = $region8
    $region5: #{tpu_custom_call.1} parent=1 // loop_body
      %s38 = ssub.s32 %s33, 1
      %s39 = ssub.s32 %s33, 2
      %s40 = sadd.s32 %s33, 1
      %s41 = ssub.s32 %s33, %s40
      %p42 = scmp.eq.s32.totalorder %s41, 0
      %s44 = sadd.s32 %s43, 1
      %s45 = scalar_select %p42, %s43, %s44
      %p48 = pneg %p42
      %p49 = scmp.eq.s32.totalorder %s33, 1
      %p50 = por %p48, %p49
      %p51 = scmp.ne.s32.totalorder %s43, %s46
      %p52 = scmp.eq.s32.totalorder %s33, 0
      %p53 = por %p51, %p52
      %p54 = scmp.ne.s32.totalorder %s43, %s46
      %p55 = scmp.eq.s32.totalorder %s38, 1
      %p56 = por %p54, %p55
      %p57 = scmp.ne.s32.totalorder %s46, %s47
      %p58 = scmp.eq.s32.totalorder %s38, 0
      %p59 = por %p57, %p58
      %p60 = scmp.ne.s32.totalorder %s46, %s47
      %p61 = scmp.eq.s32.totalorder %s39, 1
      %p62 = por %p60, %p61
      %p64 = scmp.ne.s32.totalorder %s47, %s63
      %p65 = scmp.eq.s32.totalorder %s39, 0
      %p66 = por %p64, %p65
      %s68 = sadd.s32 %s67, 1
      %p71 = scmp.eq.s32.totalorder %s33, 1
      %p72 = scmp.ne.s32.totalorder %s67, %s69
      %p73 = scmp.eq.s32.totalorder %s33, 0
      %p74 = por %p72, %p73
      %p75 = scmp.ne.s32.totalorder %s67, %s69
      %p76 = scmp.eq.s32.totalorder %s38, 1
      %p77 = por %p75, %p76
      %p78 = scmp.ne.s32.totalorder %s69, %s70
      %p79 = scmp.eq.s32.totalorder %s38, 0
      %p80 = por %p78, %p79
      %p81 = scmp.ne.s32.totalorder %s69, %s70
      %p82 = scmp.eq.s32.totalorder %s39, 1
      %p83 = por %p81, %p82
      %p85 = scmp.ne.s32.totalorder %s70, %s84
      %p86 = scmp.eq.s32.totalorder %s39, 0
      %p87 = por %p85, %p86
      %s89 = sadd.s32 %s88, 1
      %p92 = scmp.eq.s32.totalorder %s33, 1
      %p93 = scmp.ne.s32.totalorder %s88, %s90
      %p94 = scmp.eq.s32.totalorder %s33, 0
      %p95 = por %p93, %p94
      %p96 = scmp.ne.s32.totalorder %s88, %s90
      %p97 = scmp.eq.s32.totalorder %s38, 1
      %p98 = por %p96, %p97
      %p99 = scmp.ne.s32.totalorder %s90, %s91
      %p100 = scmp.eq.s32.totalorder %s38, 0
      %p101 = por %p99, %p100
      %p102 = scmp.ne.s32.totalorder %s90, %s91
      %p103 = scmp.eq.s32.totalorder %s39, 1
      %p104 = por %p102, %p103
      %p106 = scmp.ne.s32.totalorder %s91, %s105
      %p107 = scmp.eq.s32.totalorder %s39, 0
      %p108 = por %p106, %p107
      %s110 = sadd.s32 %s109, 1
      %p113 = scmp.eq.s32.totalorder %s33, 1
      %p114 = scmp.ne.s32.totalorder %s109, %s111
      %p115 = scmp.eq.s32.totalorder %s33, 0
      %p116 = por %p114, %p115
      %p117 = scmp.ne.s32.totalorder %s109, %s111
      %p118 = scmp.eq.s32.totalorder %s38, 1
      %p119 = por %p117, %p118
      %p120 = scmp.ne.s32.totalorder %s111, %s112
      %p121 = scmp.eq.s32.totalorder %s38, 0
      %p122 = por %p120, %p121
      %p123 = scmp.ne.s32.totalorder %s111, %s112
      %p124 = scmp.eq.s32.totalorder %s39, 1
      %p125 = por %p123, %p124
      %p127 = scmp.ne.s32.totalorder %s112, %s126
      %p128 = scmp.eq.s32.totalorder %s39, 0
      %p129 = por %p127, %p128
      %s131 = sadd.s32 %s130, 1
      %p134 = scmp.eq.s32.totalorder %s33, 1
      %p135 = scmp.ne.s32.totalorder %s130, %s132
      %p136 = scmp.eq.s32.totalorder %s33, 0
      %p137 = por %p135, %p136
      %p138 = scmp.ne.s32.totalorder %s130, %s132
      %p139 = scmp.eq.s32.totalorder %s38, 1
      %p140 = por %p138, %p139
      %p141 = scmp.ne.s32.totalorder %s132, %s133
      %p142 = scmp.eq.s32.totalorder %s38, 0
      %p143 = por %p141, %p142
      %p144 = scmp.ne.s32.totalorder %s132, %s133
      %p145 = scmp.eq.s32.totalorder %s39, 1
      %p146 = por %p144, %p145
      %p148 = scmp.ne.s32.totalorder %s133, %s147
      %p149 = scmp.eq.s32.totalorder %s39, 0
      %p150 = por %p148, %p149
      %s152 = sadd.s32 %s151, 1
      %p155 = scmp.eq.s32.totalorder %s33, 1
      %p156 = scmp.ne.s32.totalorder %s151, %s153
      %p157 = scmp.eq.s32.totalorder %s33, 0
      %p158 = por %p156, %p157
      %p159 = scmp.ne.s32.totalorder %s151, %s153
      %p160 = scmp.eq.s32.totalorder %s38, 1
      %p161 = por %p159, %p160
      %p162 = scmp.ne.s32.totalorder %s153, %s154
      %p163 = scmp.eq.s32.totalorder %s38, 0
      %p164 = por %p162, %p163
      %p165 = scmp.ne.s32.totalorder %s153, %s154
      %p166 = scmp.eq.s32.totalorder %s39, 1
      %p167 = por %p165, %p166
      %p169 = scmp.ne.s32.totalorder %s154, %s168
      %p170 = scmp.eq.s32.totalorder %s39, 0
      %p171 = por %p169, %p170
      %s173 = sadd.s32 %s172, 1
      %p176 = scmp.eq.s32.totalorder %s33, 1
      %p177 = scmp.ne.s32.totalorder %s172, %s174
      %p178 = scmp.eq.s32.totalorder %s33, 0
      %p179 = por %p177, %p178
      %p180 = scmp.ne.s32.totalorder %s172, %s174
      %p181 = scmp.eq.s32.totalorder %s38, 1
      %p182 = por %p180, %p181
      %p183 = scmp.ne.s32.totalorder %s174, %s175
      %p184 = scmp.eq.s32.totalorder %s38, 0
      %p185 = por %p183, %p184
      %p186 = scmp.ne.s32.totalorder %s174, %s175
      %p187 = scmp.eq.s32.totalorder %s39, 1
      %p188 = por %p186, %p187
      %p190 = scmp.ne.s32.totalorder %s175, %s189
      %p191 = scmp.eq.s32.totalorder %s39, 0
      %p192 = por %p190, %p191
      %s194 = sadd.s32 %s193, 1
      %p197 = scmp.eq.s32.totalorder %s33, 1
      %p198 = scmp.ne.s32.totalorder %s193, %s195
      %p199 = scmp.eq.s32.totalorder %s33, 0
      %p200 = por %p198, %p199
      %p201 = scmp.ne.s32.totalorder %s193, %s195
      %p202 = scmp.eq.s32.totalorder %s38, 1
      %p203 = por %p201, %p202
      %p204 = scmp.ne.s32.totalorder %s195, %s196
      %p205 = scmp.eq.s32.totalorder %s38, 0
      %p206 = por %p204, %p205
      %p207 = scmp.ne.s32.totalorder %s195, %s196
      %p208 = scmp.eq.s32.totalorder %s39, 1
      %p209 = por %p207, %p208
      %p211 = scmp.ne.s32.totalorder %s196, %s210
      %p212 = scmp.eq.s32.totalorder %s39, 0
      %p213 = por %p211, %p212
      %s215 = sadd.s32 %s214, 1
      %p218 = scmp.eq.s32.totalorder %s33, 1
      %p219 = scmp.ne.s32.totalorder %s214, %s216
      %p220 = scmp.eq.s32.totalorder %s33, 0
      %p221 = por %p219, %p220
      %p222 = scmp.ne.s32.totalorder %s214, %s216
      %p223 = scmp.eq.s32.totalorder %s38, 1
      %p224 = por %p222, %p223
      %p225 = scmp.ne.s32.totalorder %s216, %s217
      %p226 = scmp.eq.s32.totalorder %s38, 0
      %p227 = por %p225, %p226
      %p228 = scmp.ne.s32.totalorder %s216, %s217
      %p229 = scmp.eq.s32.totalorder %s39, 1
      %p230 = por %p228, %p229
      %p232 = scmp.ne.s32.totalorder %s217, %s231
      %p233 = scmp.eq.s32.totalorder %s39, 0
      %p234 = por %p232, %p233
      %s236 = sadd.s32 %s235, 1
      %p239 = scmp.eq.s32.totalorder %s33, 1
      %p240 = scmp.ne.s32.totalorder %s235, %s237
      %p241 = scmp.eq.s32.totalorder %s33, 0
      %p242 = por %p240, %p241
      %p243 = scmp.ne.s32.totalorder %s235, %s237
      %p244 = scmp.eq.s32.totalorder %s38, 1
      %p245 = por %p243, %p244
      %p246 = scmp.ne.s32.totalorder %s237, %s238
      %p247 = scmp.eq.s32.totalorder %s38, 0
      %p248 = por %p246, %p247
      %p249 = scmp.ne.s32.totalorder %s237, %s238
      %p250 = scmp.eq.s32.totalorder %s39, 1
      %p251 = por %p249, %p250
      %p253 = scmp.ne.s32.totalorder %s238, %s252
      %p254 = scmp.eq.s32.totalorder %s39, 0
      %p255 = por %p253, %p254
      %s257 = sadd.s32 %s256, 1
      %p260 = scmp.eq.s32.totalorder %s33, 1
      %p261 = scmp.ne.s32.totalorder %s256, %s258
      %p262 = scmp.eq.s32.totalorder %s33, 0
      %p263 = por %p261, %p262
      %p264 = scmp.ne.s32.totalorder %s256, %s258
      %p265 = scmp.eq.s32.totalorder %s38, 1
      %p266 = por %p264, %p265
      %p267 = scmp.ne.s32.totalorder %s258, %s259
      %p268 = scmp.eq.s32.totalorder %s38, 0
      %p269 = por %p267, %p268
      %p270 = scmp.ne.s32.totalorder %s258, %s259
      %p271 = scmp.eq.s32.totalorder %s39, 1
      %p272 = por %p270, %p271
      %p274 = scmp.ne.s32.totalorder %s259, %s273
      %p275 = scmp.eq.s32.totalorder %s39, 0
      %p276 = por %p274, %p275
      %s278 = sadd.s32 %s277, 1
      %p281 = scmp.eq.s32.totalorder %s33, 1
      %p282 = scmp.ne.s32.totalorder %s277, %s279
      %p283 = scmp.eq.s32.totalorder %s33, 0
      %p284 = por %p282, %p283
      %p285 = scmp.ne.s32.totalorder %s277, %s279
      %p286 = scmp.eq.s32.totalorder %s38, 1
      %p287 = por %p285, %p286
      %p288 = scmp.ne.s32.totalorder %s279, %s280
      %p289 = scmp.eq.s32.totalorder %s38, 0
      %p290 = por %p288, %p289
      %p291 = scmp.ne.s32.totalorder %s279, %s280
      %p292 = scmp.eq.s32.totalorder %s39, 1
      %p293 = por %p291, %p292
      %p295 = scmp.ne.s32.totalorder %s280, %s294
      %p296 = scmp.eq.s32.totalorder %s39, 0
      %p297 = por %p295, %p296
      %s299 = sadd.s32 %s298, 1
      %p302 = scmp.eq.s32.totalorder %s33, 1
      %p303 = scmp.ne.s32.totalorder %s298, %s300
      %p304 = scmp.eq.s32.totalorder %s33, 0
      %p305 = por %p303, %p304
      %p306 = scmp.ne.s32.totalorder %s298, %s300
      %p307 = scmp.eq.s32.totalorder %s38, 1
      %p308 = por %p306, %p307
      %p309 = scmp.ne.s32.totalorder %s300, %s301
      %p310 = scmp.eq.s32.totalorder %s38, 0
      %p311 = por %p309, %p310
      %p312 = scmp.ne.s32.totalorder %s300, %s301
      %p313 = scmp.eq.s32.totalorder %s39, 1
      %p314 = por %p312, %p313
      %p316 = scmp.ne.s32.totalorder %s301, %s315
      %p317 = scmp.eq.s32.totalorder %s39, 0
      %p318 = por %p316, %p317
      %s320 = sadd.s32 %s319, 1
      %p323 = scmp.eq.s32.totalorder %s33, 1
      %p324 = scmp.ne.s32.totalorder %s319, %s321
      %p325 = scmp.eq.s32.totalorder %s33, 0
      %p326 = por %p324, %p325
      %p327 = scmp.ne.s32.totalorder %s319, %s321
      %p328 = scmp.eq.s32.totalorder %s38, 1
      %p329 = por %p327, %p328
      %p330 = scmp.ne.s32.totalorder %s321, %s322
      %p331 = scmp.eq.s32.totalorder %s38, 0
      %p332 = por %p330, %p331
      %p333 = scmp.ne.s32.totalorder %s321, %s322
      %p334 = scmp.eq.s32.totalorder %s39, 1
      %p335 = por %p333, %p334
      %p337 = scmp.ne.s32.totalorder %s322, %s336
      %p338 = scmp.eq.s32.totalorder %s39, 0
      %p339 = por %p337, %p338
      %s341 = sadd.s32 %s340, 1
      %p344 = scmp.eq.s32.totalorder %s33, 1
      %p345 = scmp.ne.s32.totalorder %s340, %s342
      %p346 = scmp.eq.s32.totalorder %s33, 0
      %p347 = por %p345, %p346
      %p348 = scmp.ne.s32.totalorder %s340, %s342
      %p349 = scmp.eq.s32.totalorder %s38, 1
      %p350 = por %p348, %p349
      %p351 = scmp.ne.s32.totalorder %s342, %s343
      %p352 = scmp.eq.s32.totalorder %s38, 0
      %p353 = por %p351, %p352
      %p354 = scmp.ne.s32.totalorder %s342, %s343
      %p355 = scmp.eq.s32.totalorder %s39, 1
      %p356 = por %p354, %p355
      %p358 = scmp.ne.s32.totalorder %s343, %s357
      %p359 = scmp.eq.s32.totalorder %s39, 0
      %p360 = por %p358, %p359
      %s362 = sadd.s32 %s361, 1
      %p365 = scmp.eq.s32.totalorder %s33, 1
      %p366 = scmp.ne.s32.totalorder %s361, %s363
      %p367 = scmp.eq.s32.totalorder %s33, 0
      %p368 = por %p366, %p367
      %p369 = scmp.ne.s32.totalorder %s361, %s363
      %p370 = scmp.eq.s32.totalorder %s38, 1
      %p371 = por %p369, %p370
      %p372 = scmp.ne.s32.totalorder %s363, %s364
      %p373 = scmp.eq.s32.totalorder %s38, 0
      %p374 = por %p372, %p373
      %p375 = scmp.ne.s32.totalorder %s363, %s364
      %p376 = scmp.eq.s32.totalorder %s39, 1
      %p377 = por %p375, %p376
      %p379 = scmp.ne.s32.totalorder %s364, %s378
      %p380 = scmp.eq.s32.totalorder %s39, 0
      %p381 = por %p379, %p380
      %s383 = sadd.s32 %s382, 1
      %p386 = scmp.eq.s32.totalorder %s33, 1
      %p387 = scmp.ne.s32.totalorder %s382, %s384
      %p388 = scmp.eq.s32.totalorder %s33, 0
      %p389 = por %p387, %p388
      %p390 = scmp.ne.s32.totalorder %s382, %s384
      %p391 = scmp.eq.s32.totalorder %s38, 1
      %p392 = por %p390, %p391
      %p393 = scmp.ne.s32.totalorder %s384, %s385
      %p394 = scmp.eq.s32.totalorder %s38, 0
      %p395 = por %p393, %p394
      %p396 = scmp.ne.s32.totalorder %s384, %s385
      %p397 = scmp.eq.s32.totalorder %s39, 1
      %p398 = por %p396, %p397
      %p400 = scmp.ne.s32.totalorder %s385, %s399
      %p401 = scmp.eq.s32.totalorder %s39, 0
      %p402 = por %p400, %p401
      %s403 = ssub.s32 %s33, %s40
      %p404 = scmp.eq.s32.totalorder %s403, 0
      %s406 = sadd.s32 %s405, 1
      %s407 = scalar_select %p404, %s405, %s406
      %p410 = pneg %p404
      %p411 = scmp.eq.s32.totalorder %s33, 1
      %p412 = por %p410, %p411
      %p413 = scmp.ne.s32.totalorder %s405, %s408
      %p414 = scmp.eq.s32.totalorder %s33, 0
      %p415 = por %p413, %p414
      %p416 = scmp.ne.s32.totalorder %s405, %s408
      %p417 = scmp.eq.s32.totalorder %s38, 1
      %p418 = por %p416, %p417
      %p419 = scmp.ne.s32.totalorder %s408, %s409
      %p420 = scmp.eq.s32.totalorder %s38, 0
      %p421 = por %p419, %p420
      %p422 = scmp.ne.s32.totalorder %s408, %s409
      %p423 = scmp.eq.s32.totalorder %s39, 1
      %p424 = por %p422, %p423
      %p426 = scmp.ne.s32.totalorder %s409, %s425
      %p427 = scmp.eq.s32.totalorder %s39, 0
      %p428 = por %p426, %p427
      %p429 = scmp.le.s32.totalorder 1, %s33
      %p430 = scmp.lt.s32.totalorder %s33, 3
      %p431 = pnand %p429, %p430
      %p432 = pneg %p431
      // Predicated region
      $region9: #{tpu_custom_call.1} parent=5 // pred_check
        _
      $region10: #{tpu_custom_call.1} parent=5 // pred_check_branch
        %434 = sbr.rel (%p431) target = $region12
      $region11: #{tpu_custom_call.1} parent=5 // pred_region
        %s435 = ssub.s32 %s33, 1
        // Predicated region
        $region13: #{tpu_custom_call.1} parent=11 // pred_check
          %p436 = pneg %p80
        $region14: #{tpu_custom_call.1} parent=11 // pred_check_branch
          %438 = sbr.rel (%p436) target = $region16
        $region15: #{tpu_custom_call.1} parent=11 // pred_region
          %s440 = ssub.s32 1024, 1024
          %441 = vsyncadd [#allocation6], %s440
          %s442 = sshll.u32 [#allocation5], 4
          %s443 = int_to_ptr.vmem [resolvable:$true] %s442
          %448 = dma.hbm_to_vmem [thread:$0]  %s1, 1024, %s443, [#allocation6], 64, 64, 4
        $region16: #{tpu_custom_call.1} parent=11 // pred_fallthru
          _
        // Predicated region
        $region17: #{tpu_custom_call.1} parent=11 // pred_check
          %p449 = pneg %p101
        $region18: #{tpu_custom_call.1} parent=11 // pred_check_branch
          %451 = sbr.rel (%p449) target = $region20
        $region19: #{tpu_custom_call.1} parent=11 // pred_region
          %s453 = ssub.s32 16, 16
          %454 = vsyncadd [#allocation6], %s453
          %s456 = sshll.u32 [#allocation7], 4
          %s457 = int_to_ptr.vmem [resolvable:$true] %s456
          %459 = dma.hbm_to_vmem [thread:$0]  %s2, 16, %s457, [#allocation6]
        $region20: #{tpu_custom_call.1} parent=11 // pred_fallthru
          _
        // Predicated region
        $region21: #{tpu_custom_call.1} parent=11 // pred_check
          %p460 = pneg %p122
        $region22: #{tpu_custom_call.1} parent=11 // pred_check_branch
          %462 = sbr.rel (%p460) target = $region24
        $region23: #{tpu_custom_call.1} parent=11 // pred_region
          %s464 = ssub.s32 16, 16
          %465 = vsyncadd [#allocation9], %s464
          %s467 = sshll.u32 [#allocation8], 4
          %s468 = int_to_ptr.vmem [resolvable:$true] %s467
          %470 = dma.hbm_to_vmem [thread:$0]  %s3, 16, %s468, [#allocation9]
        $region24: #{tpu_custom_call.1} parent=11 // pred_fallthru
          _
        // Predicated region
        $region25: #{tpu_custom_call.1} parent=11 // pred_check
          %p471 = pneg %p143
        $region26: #{tpu_custom_call.1} parent=11 // pred_check_branch
          %473 = sbr.rel (%p471) target = $region28
        $region27: #{tpu_custom_call.1} parent=11 // pred_region
          %s475 = ssub.s32 16, 16
          %476 = vsyncadd [#allocation9], %s475
          %s478 = sshll.u32 [#allocation10], 4
          %s479 = int_to_ptr.vmem [resolvable:$true] %s478
          %481 = dma.hbm_to_vmem [thread:$0]  %s4, 16, %s479, [#allocation9]
        $region28: #{tpu_custom_call.1} parent=11 // pred_fallthru
          _
        // Predicated region
        $region29: #{tpu_custom_call.1} parent=11 // pred_check
          %p482 = pneg %p164
        $region30: #{tpu_custom_call.1} parent=11 // pred_check_branch
          %484 = sbr.rel (%p482) target = $region32
        $region31: #{tpu_custom_call.1} parent=11 // pred_region
          %s486 = ssub.s32 3072, 3072
          %487 = vsyncadd [#allocation12], %s486
          %s488 = sshll.u32 [#allocation11], 4
          %s489 = int_to_ptr.vmem [resolvable:$true] %s488
          %494 = dma.hbm_to_vmem [thread:$0]  %s5, 3072, %s489, [#allocation12], 192, 192, 12
        $region32: #{tpu_custom_call.1} parent=11 // pred_fallthru
          _
        // Predicated region
        $region33: #{tpu_custom_call.1} parent=11 // pred_check
          %p495 = pneg %p185
        $region34: #{tpu_custom_call.1} parent=11 // pred_check_branch
          %497 = sbr.rel (%p495) target = $region36
        $region35: #{tpu_custom_call.1} parent=11 // pred_region
          _
        $region36: #{tpu_custom_call.1} parent=11 // pred_fallthru
          _
        // Predicated region
        $region37: #{tpu_custom_call.1} parent=11 // pred_check
          %p498 = pneg %p206
        $region38: #{tpu_custom_call.1} parent=11 // pred_check_branch
          %500 = sbr.rel (%p498) target = $region40
        $region39: #{tpu_custom_call.1} parent=11 // pred_region
          %s502 = ssub.s32 1024, 1024
          %503 = vsyncadd [#allocation12], %s502
          %s504 = sshll.u32 [#allocation13], 4
          %s505 = int_to_ptr.vmem [resolvable:$true] %s504
          %510 = dma.hbm_to_vmem [thread:$0]  %s7, 1024, %s505, [#allocation12], 64, 64, 4
        $region40: #{tpu_custom_call.1} parent=11 // pred_fallthru
          _
        // Predicated region
        $region41: #{tpu_custom_call.1} parent=11 // pred_check
          %p511 = pneg %p227
        $region42: #{tpu_custom_call.1} parent=11 // pred_check_branch
          %513 = sbr.rel (%p511) target = $region44
        $region43: #{tpu_custom_call.1} parent=11 // pred_region
          _
        $region44: #{tpu_custom_call.1} parent=11 // pred_fallthru
          _
        // Predicated region
        $region45: #{tpu_custom_call.1} parent=11 // pred_check
          %p514 = pneg %p248
        $region46: #{tpu_custom_call.1} parent=11 // pred_check_branch
          %516 = sbr.rel (%p514) target = $region48
        $region47: #{tpu_custom_call.1} parent=11 // pred_region
          _
        $region48: #{tpu_custom_call.1} parent=11 // pred_fallthru
          _
        // Predicated region
        $region49: #{tpu_custom_call.1} parent=11 // pred_check
          %p517 = pneg %p269
        $region50: #{tpu_custom_call.1} parent=11 // pred_check_branch
          %519 = sbr.rel (%p517) target = $region52
        $region51: #{tpu_custom_call.1} parent=11 // pred_region
          _
        $region52: #{tpu_custom_call.1} parent=11 // pred_fallthru
          _
        // Predicated region
        $region53: #{tpu_custom_call.1} parent=11 // pred_check
          %p520 = pneg %p290
        $region54: #{tpu_custom_call.1} parent=11 // pred_check_branch
          %522 = sbr.rel (%p520) target = $region56
        $region55: #{tpu_custom_call.1} parent=11 // pred_region
          %s524 = ssub.s32 4096, 4096
          %525 = vsyncadd [#allocation15], %s524
          %s526 = sshll.u32 [#allocation14], 4
          %s527 = int_to_ptr.vmem [resolvable:$true] %s526
          %532 = dma.hbm_to_vmem [thread:$0]  %s11, 4096, %s527, [#allocation15], 256, 256, 16
        $region56: #{tpu_custom_call.1} parent=11 // pred_fallthru
          _
        // Predicated region
        $region57: #{tpu_custom_call.1} parent=11 // pred_check
          %p533 = pneg %p311
        $region58: #{tpu_custom_call.1} parent=11 // pred_check_branch
          %535 = sbr.rel (%p533) target = $region60
        $region59: #{tpu_custom_call.1} parent=11 // pred_region
          _
        $region60: #{tpu_custom_call.1} parent=11 // pred_fallthru
          _
        // Predicated region
        $region61: #{tpu_custom_call.1} parent=11 // pred_check
          %p536 = pneg %p332
        $region62: #{tpu_custom_call.1} parent=11 // pred_check_branch
          %538 = sbr.rel (%p536) target = $region64
        $region63: #{tpu_custom_call.1} parent=11 // pred_region
          %s540 = ssub.s32 4096, 4096
          %541 = vsyncadd [#allocation15], %s540
          %s542 = sshll.u32 [#allocation16], 4
          %s543 = int_to_ptr.vmem [resolvable:$true] %s542
          %548 = dma.hbm_to_vmem [thread:$0]  %s13, 4096, %s543, [#allocation15], 64, 64, 4
        $region64: #{tpu_custom_call.1} parent=11 // pred_fallthru
          _
        // Predicated region
        $region65: #{tpu_custom_call.1} parent=11 // pred_check
          %p549 = pneg %p353
        $region66: #{tpu_custom_call.1} parent=11 // pred_check_branch
          %551 = sbr.rel (%p549) target = $region68
        $region67: #{tpu_custom_call.1} parent=11 // pred_region
          _
        $region68: #{tpu_custom_call.1} parent=11 // pred_fallthru
          _
        // Predicated region
        $region69: #{tpu_custom_call.1} parent=11 // pred_check
          %p552 = pneg %p374
        $region70: #{tpu_custom_call.1} parent=11 // pred_check_branch
          %554 = sbr.rel (%p552) target = $region72
        $region71: #{tpu_custom_call.1} parent=11 // pred_region
          _
        $region72: #{tpu_custom_call.1} parent=11 // pred_fallthru
          _
        // Predicated region
        $region73: #{tpu_custom_call.1} parent=11 // pred_check
          %p555 = pneg %p395
        $region74: #{tpu_custom_call.1} parent=11 // pred_check_branch
          %557 = sbr.rel (%p555) target = $region76
        $region75: #{tpu_custom_call.1} parent=11 // pred_region
          _
        $region76: #{tpu_custom_call.1} parent=11 // pred_fallthru
          _
      $region12: #{tpu_custom_call.1} parent=5 // pred_fallthru
        _
      %p558 = scmp.lt.s32.totalorder %s33, 2
      // Predicated region
      $region77: #{tpu_custom_call.1} parent=5 // pred_check
        %p559 = pneg %p558
      $region78: #{tpu_custom_call.1} parent=5 // pred_check_branch
        %561 = sbr.rel (%p559) target = $region80
      $region79: #{tpu_custom_call.1} parent=5 // pred_region
        // Predicated region
        $region81: #{tpu_custom_call.1} parent=79 // pred_check
          %p562 = pneg %p53
        $region82: #{tpu_custom_call.1} parent=79 // pred_check_branch
          %564 = sbr.rel (%p562) target = $region84
        $region83: #{tpu_custom_call.1} parent=79 // pred_region
          %s565 = sand.u32 %s43, 1
          %s566 = scalar_lea.sflag [#allocation3], %s565
          %s567 = sand.u32 %s43, 1
          %s568 = smul.addr %s567, 8
          %s569 = scalar_lea.vmem [#allocation2], %s568
          %s571 = ssub.s32 128, 128
          %572 = vsyncadd %s566, %s571
          %s573 = smul.addr %s33, 2
          %s574 = smul.addr %s573, 64
          %s575 = scalar_lea.hbm %s0, %s574
          %s576 = sshll.u32 %s569, 4
          %s577 = int_to_ptr.vmem [resolvable:$true] %s576
          %582 = dma.hbm_to_vmem [thread:$0]  %s575, 128, %s577, %s566, 64, 64, 4
        $region84: #{tpu_custom_call.1} parent=79 // pred_fallthru
          _
      $region80: #{tpu_custom_call.1} parent=5 // pred_fallthru
        _
      %p583 = scmp.le.s32.totalorder 1, %s33
      %p584 = scmp.lt.s32.totalorder %s33, 3
      %p585 = pnand %p583, %p584
      %p586 = pneg %p585
      // Predicated region
      $region85: #{tpu_custom_call.1} parent=5 // pred_check
        _
      $region86: #{tpu_custom_call.1} parent=5 // pred_check_branch
        %588 = sbr.rel (%p585) target = $region88
      $region87: #{tpu_custom_call.1} parent=5 // pred_region
        %s589 = ssub.s32 %s33, 1
        %s590 = sand.u32 %s46, 1
        %s591 = scalar_lea.sflag [#allocation3], %s590
        %s592 = sand.u32 %s46, 1
        %s593 = smul.addr %s592, 8
        %s594 = scalar_lea.vmem [#allocation2], %s593
        // Predicated region
        $region89: #{tpu_custom_call.1} parent=87 // pred_check
          %p595 = pneg %p59
        $region90: #{tpu_custom_call.1} parent=87 // pred_check_branch
          %597 = sbr.rel (%p595) target = $region92
        $region91: #{tpu_custom_call.1} parent=87 // pred_region
          %598 = dma.done %s591, 128
        $region92: #{tpu_custom_call.1} parent=87 // pred_fallthru
          _
        // Predicated region
        $region93: #{tpu_custom_call.1} parent=87 // pred_check
          %p599 = pneg %p80
        $region94: #{tpu_custom_call.1} parent=87 // pred_check_branch
          %601 = sbr.rel (%p599) target = $region96
        $region95: #{tpu_custom_call.1} parent=87 // pred_region
          %602 = dma.done [#allocation6], 1024
        $region96: #{tpu_custom_call.1} parent=87 // pred_fallthru
          _
        // Predicated region
        $region97: #{tpu_custom_call.1} parent=87 // pred_check
          %p603 = pneg %p101
        $region98: #{tpu_custom_call.1} parent=87 // pred_check_branch
          %605 = sbr.rel (%p603) target = $region100
        $region99: #{tpu_custom_call.1} parent=87 // pred_region
          %606 = dma.done [#allocation6], 16
        $region100: #{tpu_custom_call.1} parent=87 // pred_fallthru
          _
        // Predicated region
        $region101: #{tpu_custom_call.1} parent=87 // pred_check
          %p607 = pneg %p122
        $region102: #{tpu_custom_call.1} parent=87 // pred_check_branch
          %609 = sbr.rel (%p607) target = $region104
        $region103: #{tpu_custom_call.1} parent=87 // pred_region
          %610 = dma.done [#allocation9], 16
        $region104: #{tpu_custom_call.1} parent=87 // pred_fallthru
          _
        // Predicated region
        $region105: #{tpu_custom_call.1} parent=87 // pred_check
          %p611 = pneg %p143
        $region106: #{tpu_custom_call.1} parent=87 // pred_check_branch
          %613 = sbr.rel (%p611) target = $region108
        $region107: #{tpu_custom_call.1} parent=87 // pred_region
          %614 = dma.done [#allocation9], 16
        $region108: #{tpu_custom_call.1} parent=87 // pred_fallthru
          _
        // Predicated region
        $region109: #{tpu_custom_call.1} parent=87 // pred_check
          %p615 = pneg %p164
        $region110: #{tpu_custom_call.1} parent=87 // pred_check_branch
          %617 = sbr.rel (%p615) target = $region112
        $region111: #{tpu_custom_call.1} parent=87 // pred_region
          %618 = dma.done [#allocation12], 3072
        $region112: #{tpu_custom_call.1} parent=87 // pred_fallthru
          _
        // Predicated region
        $region113: #{tpu_custom_call.1} parent=87 // pred_check
          %p619 = pneg %p206
        $region114: #{tpu_custom_call.1} parent=87 // pred_check_branch
          %621 = sbr.rel (%p619) target = $region116
        $region115: #{tpu_custom_call.1} parent=87 // pred_region
          %622 = dma.done [#allocation12], 1024
        $region116: #{tpu_custom_call.1} parent=87 // pred_fallthru
          _
        // Predicated region
        $region117: #{tpu_custom_call.1} parent=87 // pred_check
          %p623 = pneg %p290
        $region118: #{tpu_custom_call.1} parent=87 // pred_check_branch
          %625 = sbr.rel (%p623) target = $region120
        $region119: #{tpu_custom_call.1} parent=87 // pred_region
          %626 = dma.done [#allocation15], 4096
        $region120: #{tpu_custom_call.1} parent=87 // pred_fallthru
          _
        // Predicated region
        $region121: #{tpu_custom_call.1} parent=87 // pred_check
          %p627 = pneg %p332
        $region122: #{tpu_custom_call.1} parent=87 // pred_check_branch
          %629 = sbr.rel (%p627) target = $region124
        $region123: #{tpu_custom_call.1} parent=87 // pred_region
          %630 = dma.done [#allocation15], 4096
        $region124: #{tpu_custom_call.1} parent=87 // pred_fallthru
          _
        %s631 = sand.u32 %s46, 1
        %s632 = scalar_lea.sflag [#allocation3], %s631
        %s633 = sand.u32 %s46, 1
        %s634 = smul.addr %s633, 8
        %s635 = scalar_lea.vmem [#allocation2], %s634
        %p636 = pneg %p59
        %p637 = pneg %p56
        %p638 = pneg %p80
        %p639 = pneg %p77
        %p640 = pneg %p101
        %p641 = pneg %p98
        %p642 = pneg %p122
        %p643 = pneg %p119
        %p644 = pneg %p143
        %p645 = pneg %p140
        %p646 = pneg %p164
        %p647 = pneg %p161
        %p648 = pneg %p185
        %p649 = pneg %p182
        %p650 = pneg %p206
        %p651 = pneg %p203
        %p652 = pneg %p227
        %p653 = pneg %p224
        %p654 = pneg %p248
        %p655 = pneg %p245
        %p656 = pneg %p269
        %p657 = pneg %p266
        %p658 = pneg %p290
        %p659 = pneg %p287
        %p660 = pneg %p311
        %p661 = pneg %p308
        %p662 = pneg %p332
        %p663 = pneg %p329
        %p664 = pneg %p353
        %p665 = pneg %p350
        %p666 = pneg %p374
        %p667 = pneg %p371
        %p668 = pneg %p395
        %p669 = pneg %p392
        %p670 = pneg %p421
        %p671 = pneg %p418
        %s672 = sand.u32 %s408, 1
        %s673 = scalar_lea.sflag [#allocation4], %s672
        %s674 = sand.u32 %s408, 1
        %s675 = smul.addr %s674, 16
        %s676 = scalar_lea.vmem [#allocation17], %s675
        %v678 = vld [vmem:[%s594] sm:$0xf]
        %v679 = vld [vmem:[%s594 + $0x4] sm:$0xf]
        %v680 = vld [vmem:[#allocation5] sm:$0xf]
        %v681 = vld [vmem:[#allocation5 + $0x4] sm:$0xf]
        %v682 = vld [vmem:[#allocation5 + $0x8] sm:$0xf]
        %v683 = vld [vmem:[#allocation5 + $0xc] sm:$0xf]
        %v684 = vld [vmem:[#allocation5 + $0x10] sm:$0xf]
        %v685 = vld [vmem:[#allocation5 + $0x14] sm:$0xf]
        %v686 = vld [vmem:[#allocation5 + $0x18] sm:$0xf]
        %v687 = vld [vmem:[#allocation5 + $0x1c] sm:$0xf]
        %v688 = vld [vmem:[#allocation5 + $0x20] sm:$0xf]
        %v689 = vld [vmem:[#allocation5 + $0x24] sm:$0xf]
        %v690 = vld [vmem:[#allocation5 + $0x28] sm:$0xf]
        %v691 = vld [vmem:[#allocation5 + $0x2c] sm:$0xf]
        %v692 = vld [vmem:[#allocation5 + $0x30] sm:$0xf]
        %v693 = vld [vmem:[#allocation5 + $0x34] sm:$0xf]
        %v694 = vld [vmem:[#allocation5 + $0x38] sm:$0xf]
        %v695 = vld [vmem:[#allocation5 + $0x3c] sm:$0xf]
        %v696 = vld [vmem:[#allocation7] sm:$0x1]
        %v698 = vlaneseq
        %v699 = vshrl.u32 %v698, 7
        %v700 = vsub.s32 0, %v699
        %v701 = vrot.slane %v696, %v700
        %v705 = vunpack.c.l.b16 %v678
        %v706 = vunpack.c.l.b16 %v679
        %v707 = vpack.c.b16 %v706, %v705
        %v725 = vunpack.c.l.b16 %v680
        %v726 = vunpack.c.l.b16 %v681
        %v727 = vunpack.c.l.b16 %v682
        %v728 = vunpack.c.l.b16 %v683
        %v729 = vunpack.c.l.b16 %v684
        %v730 = vunpack.c.l.b16 %v685
        %v731 = vunpack.c.l.b16 %v686
        %v732 = vunpack.c.l.b16 %v687
        %v733 = vunpack.c.l.b16 %v688
        %v734 = vunpack.c.l.b16 %v689
        %v735 = vunpack.c.l.b16 %v690
        %v736 = vunpack.c.l.b16 %v691
        %v737 = vunpack.c.l.b16 %v692
        %v738 = vunpack.c.l.b16 %v693
        %v739 = vunpack.c.l.b16 %v694
        %v740 = vunpack.c.l.b16 %v695
        %v741 = vpack.c.b16 %v726, %v725
        %v742 = vpack.c.b16 %v728, %v727
        %v743 = vpack.c.b16 %v730, %v729
        %v744 = vpack.c.b16 %v732, %v731
        %v745 = vpack.c.b16 %v734, %v733
        %v746 = vpack.c.b16 %v736, %v735
        %v747 = vpack.c.b16 %v738, %v737
        %v748 = vpack.c.b16 %v740, %v739
        %757 = vmatprep.subr.bf16.mxu0 0
        %758 = vmatpush1.bf16.msra.mxu0 %v748
        %759 = vmatprep.subr.bf16.mxu0 0
        %760 = vmatpush1.bf16.msra.mxu0 %v747
        %761 = vmatprep.subr.bf16.mxu0 0
        %762 = vmatpush1.bf16.msra.mxu0 %v746
        %763 = vmatprep.subr.bf16.mxu0 0
        %764 = vmatpush1.bf16.msra.mxu0 %v745
        %765 = vmatprep.subr.bf16.mxu0 0
        %766 = vmatpush1.bf16.msra.mxu0 %v744
        %767 = vmatprep.subr.bf16.mxu0 0
        %768 = vmatpush1.bf16.msra.mxu0 %v743
        %769 = vmatprep.subr.bf16.mxu0 0
        %770 = vmatpush1.bf16.msra.mxu0 %v742
        %771 = vmatprep.subr.bf16.mxu0 0
        %772 = vmatpush1.bf16.msra.mxu0 %v741
        %773 = vmatprep.subr.bf16.mxu0 0
        %774 = vmatpush2.bf16.msra.mxu0 0
        %775 = vmatprep.subr.bf16.mxu0 0
        %776 = vmatpush2.bf16.msra.mxu0 0
        %777 = vmatprep.subr.bf16.mxu0 0
        %778 = vmatpush2.bf16.msra.mxu0 0
        %779 = vmatprep.subr.bf16.mxu0 0
        %780 = vmatpush2.bf16.msra.mxu0 0
        %781 = vmatprep.subr.bf16.mxu0 0
        %782 = vmatpush2.bf16.msra.mxu0 0
        %783 = vmatprep.subr.bf16.mxu0 0
        %784 = vmatpush2.bf16.msra.mxu0 0
        %785 = vmatprep.subr.bf16.mxu0 0
        %786 = vmatpush2.bf16.msra.mxu0 0
        %787 = vmatprep.subr.bf16.mxu0 0
        %788 = vmatpush2.bf16.msra.mxu0 0
        %789 = vmatprep.mubr.bf16.mxu0 0
        %790 = vmatmul.mubr.bf16.gmra.mxu0 %v707
        %v791 = vpop.f32.mrf.mxu0
        %v792 = vadd.f32 %v701, %v791
        %v793 = vpop.f32.mrf.mxu0
        %v794 = vpop.f32.mrf.mxu0
        %v795 = vadd.f32 %v701, %v794
        %v796 = vpop.f32.mrf.mxu0
        %797 = vdwg.mxu0
        %v798 = vld [vmem:[#allocation8] sm:$0x1]
        %v799 = vld [vmem:[#allocation10] sm:$0x1]
        %800 = vadd.xlane.f32.xlu0 %v792
        %v801 = vpop.xlane.xlu0 %800
        %802 = vadd.xlane.f32.xlu0 %v795
        %v803 = vpop.xlane.xlu0 %802
        %v804 = vrcp.pop 128.0
        %v805 = vmul.f32 %v801, %v804
        %v806 = vmul.f32 %v803, %v804
        %v807 = vsub.f32 %v792, %v805
        %v808 = vsub.f32 %v795, %v806
        %v809 = vmul.f32 %v807, %v807
        %v810 = vmul.f32 %v808, %v808
        %811 = vadd.xlane.f32.xlu0 %v809
        %v812 = vpop.xlane.xlu0 %811
        %813 = vadd.xlane.f32.xlu0 %v810
        %v814 = vpop.xlane.xlu0 %813
        %v815 = vmul.f32 %v812, %v804
        %v816 = vmul.f32 %v814, %v804
        %v817 = vadd.f32 %v815, 1e-05
        %v818 = vadd.f32 %v816, 1e-05
        %v819 = vrsqrt.pop %v817
        %v820 = vrsqrt.pop %v818
        %v821 = vmul.f32 %v807, %v819
        %v822 = vmul.f32 %v808, %v820
        %v824 = vlaneseq
        %v825 = vshrl.u32 %v824, 7
        %v826 = vsub.s32 0, %v825
        %v827 = vrot.slane %v798, %v826
        %v829 = vmul.f32 %v821, %v827
        %v830 = vmul.f32 %v822, %v827
        %v832 = vlaneseq
        %v833 = vshrl.u32 %v832, 7
        %v834 = vsub.s32 0, %v833
        %v835 = vrot.slane %v799, %v834
        %v837 = vadd.f32 %v829, %v835
        %v838 = vadd.f32 %v830, %v835
        %v839 = vpack.c.bf16 %v838, %v837
        %v840 = vld [vmem:[#allocation11] sm:$0xff]
        %v841 = vld [vmem:[#allocation11 + $0x8] sm:$0xf]
        %v842 = vld [vmem:[#allocation11 + $0xc] sm:$0xff]
        %v843 = vld [vmem:[#allocation11 + $0x14] sm:$0xf]
        %v844 = vld [vmem:[#allocation11 + $0x18] sm:$0xff]
        %v845 = vld [vmem:[#allocation11 + $0x20] sm:$0xf]
        %v846 = vld [vmem:[#allocation11 + $0x24] sm:$0xff]
        %v847 = vld [vmem:[#allocation11 + $0x2c] sm:$0xf]
        %v848 = vld [vmem:[#allocation11 + $0x30] sm:$0xff]
        %v849 = vld [vmem:[#allocation11 + $0x38] sm:$0xf]
        %v850 = vld [vmem:[#allocation11 + $0x3c] sm:$0xff]
        %v851 = vld [vmem:[#allocation11 + $0x44] sm:$0xf]
        %v852 = vld [vmem:[#allocation11 + $0x48] sm:$0xff]
        %v853 = vld [vmem:[#allocation11 + $0x50] sm:$0xf]
        %v854 = vld [vmem:[#allocation11 + $0x54] sm:$0xff]
        %v855 = vld [vmem:[#allocation11 + $0x5c] sm:$0xf]
        %v856 = vld [vmem:[#allocation11 + $0x60] sm:$0xff]
        %v857 = vld [vmem:[#allocation11 + $0x68] sm:$0xf]
        %v858 = vld [vmem:[#allocation11 + $0x6c] sm:$0xff]
        %v859 = vld [vmem:[#allocation11 + $0x74] sm:$0xf]
        %v860 = vld [vmem:[#allocation11 + $0x78] sm:$0xff]
        %v861 = vld [vmem:[#allocation11 + $0x80] sm:$0xf]
        %v862 = vld [vmem:[#allocation11 + $0x84] sm:$0xff]
        %v863 = vld [vmem:[#allocation11 + $0x8c] sm:$0xf]
        %v864 = vld [vmem:[#allocation11 + $0x90] sm:$0xff]
        %v865 = vld [vmem:[#allocation11 + $0x98] sm:$0xf]
        %v866 = vld [vmem:[#allocation11 + $0x9c] sm:$0xff]
        %v867 = vld [vmem:[#allocation11 + $0xa4] sm:$0xf]
        %v868 = vld [vmem:[#allocation11 + $0xa8] sm:$0xff]
        %v869 = vld [vmem:[#allocation11 + $0xb0] sm:$0xf]
        %v870 = vld [vmem:[#allocation11 + $0xb4] sm:$0xff]
        %v871 = vld [vmem:[#allocation11 + $0xbc] sm:$0xf]
        %v872 = vld [vmem:[%s6] sm:$0x7]
        %v874 = vlaneseq
        %v875 = vshrl.u32 %v874, 7
        %v876 = vsub.s32 0, %v875
        %v877 = vrot.slane %v872, %v876
        %v878 = vlaneseq
        %v879 = vshrl.u32 %v878, 7
        %v880 = vsub.s32 1, %v879
        %v881 = vrot.slane %v872, %v880
        %v882 = vlaneseq
        %v883 = vshrl.u32 %v882, 7
        %v884 = vsub.s32 2, %v883
        %v885 = vrot.slane %v872, %v884
        %v921 = vunpack.c.l.b16 %v840
        %v922 = vunpack.c.h.b16 %v840
        %v923 = vunpack.c.l.b16 %v841
        %v924 = vunpack.c.l.b16 %v842
        %v925 = vunpack.c.h.b16 %v842
        %v926 = vunpack.c.l.b16 %v843
        %v927 = vunpack.c.l.b16 %v844
        %v928 = vunpack.c.h.b16 %v844
        %v929 = vunpack.c.l.b16 %v845
        %v930 = vunpack.c.l.b16 %v846
        %v931 = vunpack.c.h.b16 %v846
        %v932 = vunpack.c.l.b16 %v847
        %v933 = vunpack.c.l.b16 %v848
        %v934 = vunpack.c.h.b16 %v848
        %v935 = vunpack.c.l.b16 %v849
        %v936 = vunpack.c.l.b16 %v850
        %v937 = vunpack.c.h.b16 %v850
        %v938 = vunpack.c.l.b16 %v851
        %v939 = vunpack.c.l.b16 %v852
        %v940 = vunpack.c.h.b16 %v852
        %v941 = vunpack.c.l.b16 %v853
        %v942 = vunpack.c.l.b16 %v854
        %v943 = vunpack.c.h.b16 %v854
        %v944 = vunpack.c.l.b16 %v855
        %v945 = vunpack.c.l.b16 %v856
        %v946 = vunpack.c.h.b16 %v856
        %v947 = vunpack.c.l.b16 %v857
        %v948 = vunpack.c.l.b16 %v858
        %v949 = vunpack.c.h.b16 %v858
        %v950 = vunpack.c.l.b16 %v859
        %v951 = vunpack.c.l.b16 %v860
        %v952 = vunpack.c.h.b16 %v860
        %v953 = vunpack.c.l.b16 %v861
        %v954 = vunpack.c.l.b16 %v862
        %v955 = vunpack.c.h.b16 %v862
        %v956 = vunpack.c.l.b16 %v863
        %v957 = vunpack.c.l.b16 %v864
        %v958 = vunpack.c.h.b16 %v864
        %v959 = vunpack.c.l.b16 %v865
        %v960 = vunpack.c.l.b16 %v866
        %v961 = vunpack.c.h.b16 %v866
        %v962 = vunpack.c.l.b16 %v867
        %v963 = vunpack.c.l.b16 %v868
        %v964 = vunpack.c.h.b16 %v868
        %v965 = vunpack.c.l.b16 %v869
        %v966 = vunpack.c.l.b16 %v870
        %v967 = vunpack.c.h.b16 %v870
        %v968 = vunpack.c.l.b16 %v871
        %v969 = vpack.c.b16 %v924, %v921
        %v970 = vpack.c.b16 %v925, %v922
        %v971 = vpack.c.b16 %v926, %v923
        %v972 = vpack.c.b16 %v930, %v927
        %v973 = vpack.c.b16 %v931, %v928
        %v974 = vpack.c.b16 %v932, %v929
        %v975 = vpack.c.b16 %v936, %v933
        %v976 = vpack.c.b16 %v937, %v934
        %v977 = vpack.c.b16 %v938, %v935
        %v978 = vpack.c.b16 %v942, %v939
        %v979 = vpack.c.b16 %v943, %v940
        %v980 = vpack.c.b16 %v944, %v941
        %v981 = vpack.c.b16 %v948, %v945
        %v982 = vpack.c.b16 %v949, %v946
        %v983 = vpack.c.b16 %v950, %v947
        %v984 = vpack.c.b16 %v954, %v951
        %v985 = vpack.c.b16 %v955, %v952
        %v986 = vpack.c.b16 %v956, %v953
        %v987 = vpack.c.b16 %v960, %v957
        %v988 = vpack.c.b16 %v961, %v958
        %v989 = vpack.c.b16 %v962, %v959
        %v990 = vpack.c.b16 %v966, %v963
        %v991 = vpack.c.b16 %v967, %v964
        %v992 = vpack.c.b16 %v968, %v965
        %1017 = vmatprep.subr.bf16.mxu0 %v991
        %1018 = vmatpush1.bf16.msra.mxu0 %v990
        %1019 = vmatprep.subr.bf16.mxu0 %v988
        %1020 = vmatpush1.bf16.msra.mxu0 %v987
        %1021 = vmatprep.subr.bf16.mxu0 %v985
        %1022 = vmatpush1.bf16.msra.mxu0 %v984
        %1023 = vmatprep.subr.bf16.mxu0 %v982
        %1024 = vmatpush1.bf16.msra.mxu0 %v981
        %1025 = vmatprep.subr.bf16.mxu0 %v979
        %1026 = vmatpush1.bf16.msra.mxu0 %v978
        %1027 = vmatprep.subr.bf16.mxu0 %v976
        %1028 = vmatpush1.bf16.msra.mxu0 %v975
        %1029 = vmatprep.subr.bf16.mxu0 %v973
        %1030 = vmatpush1.bf16.msra.mxu0 %v972
        %1031 = vmatprep.subr.bf16.mxu0 %v970
        %1032 = vmatpush1.bf16.msra.mxu0 %v969
        %1033 = vmatprep.subr.bf16.mxu0 0
        %1034 = vmatpush2.bf16.msra.mxu0 0
        %1035 = vmatprep.subr.bf16.mxu0 0
        %1036 = vmatpush2.bf16.msra.mxu0 0
        %1037 = vmatprep.subr.bf16.mxu0 0
        %1038 = vmatpush2.bf16.msra.mxu0 0
        %1039 = vmatprep.subr.bf16.mxu0 0
        %1040 = vmatpush2.bf16.msra.mxu0 0
        %1041 = vmatprep.subr.bf16.mxu0 0
        %1042 = vmatpush2.bf16.msra.mxu0 0
        %1043 = vmatprep.subr.bf16.mxu0 0
        %1044 = vmatpush2.bf16.msra.mxu0 0
        %1045 = vmatprep.subr.bf16.mxu0 0
        %1046 = vmatpush2.bf16.msra.mxu0 0
        %1047 = vmatprep.subr.bf16.mxu0 0
        %1048 = vmatpush2.bf16.msra.mxu0 0
        %1049 = vmatprep.mubr.bf16.mxu0 0
        %1050 = vmatmul.mubr.bf16.gmra.mxu0 %v839
        %v1051 = vpop.f32.mrf.mxu0
        %v1052 = vadd.f32 %v877, %v1051
        %v1053 = vpop.f32.mrf.mxu0
        %v1054 = vadd.f32 %v881, %v1053
        %v1055 = vpop.f32.mrf.mxu0
        %v1056 = vadd.f32 %v877, %v1055
        %v1057 = vpop.f32.mrf.mxu0
        %v1058 = vadd.f32 %v881, %v1057
        %1059 = vdwg.mxu0
        %1060 = vmatprep.subr.bf16.mxu0 0
        %1061 = vmatpush1.bf16.msra.mxu0 %v992
        %1062 = vmatprep.subr.bf16.mxu0 0
        %1063 = vmatpush1.bf16.msra.mxu0 %v989
        %1064 = vmatprep.subr.bf16.mxu0 0
        %1065 = vmatpush1.bf16.msra.mxu0 %v986
        %1066 = vmatprep.subr.bf16.mxu0 0
        %1067 = vmatpush1.bf16.msra.mxu0 %v983
        %1068 = vmatprep.subr.bf16.mxu0 0
        %1069 = vmatpush1.bf16.msra.mxu0 %v980
        %1070 = vmatprep.subr.bf16.mxu0 0
        %1071 = vmatpush1.bf16.msra.mxu0 %v977
        %1072 = vmatprep.subr.bf16.mxu0 0
        %1073 = vmatpush1.bf16.msra.mxu0 %v974
        %1074 = vmatprep.subr.bf16.mxu0 0
        %1075 = vmatpush1.bf16.msra.mxu0 %v971
        %1076 = vmatprep.subr.bf16.mxu0 0
        %1077 = vmatpush2.bf16.msra.mxu0 0
        %1078 = vmatprep.subr.bf16.mxu0 0
        %1079 = vmatpush2.bf16.msra.mxu0 0
        %1080 = vmatprep.subr.bf16.mxu0 0
        %1081 = vmatpush2.bf16.msra.mxu0 0
        %1082 = vmatprep.subr.bf16.mxu0 0
        %1083 = vmatpush2.bf16.msra.mxu0 0
        %1084 = vmatprep.subr.bf16.mxu0 0
        %1085 = vmatpush2.bf16.msra.mxu0 0
        %1086 = vmatprep.subr.bf16.mxu0 0
        %1087 = vmatpush2.bf16.msra.mxu0 0
        %1088 = vmatprep.subr.bf16.mxu0 0
        %1089 = vmatpush2.bf16.msra.mxu0 0
        %1090 = vmatprep.subr.bf16.mxu0 0
        %1091 = vmatpush2.bf16.msra.mxu0 0
        %1092 = vmatprep.mubr.bf16.mxu0 0
        %1093 = vmatmul.mubr.bf16.gmra.mxu0 %v839
        %v1094 = vpop.f32.mrf.mxu0
        %v1095 = vadd.f32 %v885, %v1094
        %v1096 = vpop.f32.mrf.mxu0
        %v1097 = vpop.f32.mrf.mxu0
        %v1098 = vadd.f32 %v885, %v1097
        %v1099 = vpop.f32.mrf.mxu0
        %1100 = vdwg.mxu0
        %1103 = vrot.lane.b32.xlu0 %v1052, 96
        %v1104 = vpop.permute.xlu0 %1103
        %1105 = vrot.lane.b32.xlu0 %v1056, 96
        %v1106 = vpop.permute.xlu0 %1105
        %1109 = vrot.lane.b32.xlu0 %v1052, 64
        %v1110 = vpop.permute.xlu0 %1109
        %1111 = vrot.lane.b32.xlu0 %v1056, 64
        %v1112 = vpop.permute.xlu0 %1111
        %1115 = vrot.lane.b32.xlu0 %v1052, 32
        %v1116 = vpop.permute.xlu0 %1115
        %1117 = vrot.lane.b32.xlu0 %v1056, 32
        %v1118 = vpop.permute.xlu0 %1117
        %v1121 = vpack.c.bf16 %v1056, %v1052
        %v1122 = vpack.c.bf16 %v1106, %v1104
        %v1123 = vpack.c.bf16 %v1112, %v1110
        %v1124 = vpack.c.bf16 %v1118, %v1116
        %1127 = vrot.lane.b32.xlu0 %v1054, 96
        %v1128 = vpop.permute.xlu0 %1127
        %1129 = vrot.lane.b32.xlu0 %v1058, 96
        %v1130 = vpop.permute.xlu0 %1129
        %1133 = vrot.lane.b32.xlu0 %v1054, 64
        %v1134 = vpop.permute.xlu0 %1133
        %1135 = vrot.lane.b32.xlu0 %v1058, 64
        %v1136 = vpop.permute.xlu0 %1135
        %1139 = vrot.lane.b32.xlu0 %v1054, 32
        %v1140 = vpop.permute.xlu0 %1139
        %1141 = vrot.lane.b32.xlu0 %v1058, 32
        %v1142 = vpop.permute.xlu0 %1141
        %v1145 = vpack.c.bf16 %v1058, %v1054
        %v1146 = vpack.c.bf16 %v1130, %v1128
        %v1147 = vpack.c.bf16 %v1136, %v1134
        %v1148 = vpack.c.bf16 %v1142, %v1140
        %1151 = vrot.lane.b32.xlu0 %v1095, 96
        %v1152 = vpop.permute.xlu0 %1151
        %1153 = vrot.lane.b32.xlu0 %v1098, 96
        %v1154 = vpop.permute.xlu0 %1153
        %1157 = vrot.lane.b32.xlu0 %v1095, 64
        %v1158 = vpop.permute.xlu0 %1157
        %1159 = vrot.lane.b32.xlu0 %v1098, 64
        %v1160 = vpop.permute.xlu0 %1159
        %1163 = vrot.lane.b32.xlu0 %v1095, 32
        %v1164 = vpop.permute.xlu0 %1163
        %1165 = vrot.lane.b32.xlu0 %v1098, 32
        %v1166 = vpop.permute.xlu0 %1165
        %v1169 = vpack.c.bf16 %v1098, %v1095
        %v1170 = vpack.c.bf16 %v1154, %v1152
        %v1171 = vpack.c.bf16 %v1160, %v1158
        %v1172 = vpack.c.bf16 %v1166, %v1164
        %vm1173 = vcmask 261120
        %v1175 = vsel %vm1173, %v1121, 0
        %v1178 = vsel %vm1173, %v1145, 0
        %1180 = vmatprep.subr.bf16.mxu0 0
        %1181 = vmatpush1.bf16.xpose.msra.mxu0 0
        %1182 = vmatprep.subr.bf16.mxu0 0
        %1183 = vmatpush1.bf16.xpose.msra.mxu0 0
        %1184 = vmatprep.subr.bf16.mxu0 0
        %1185 = vmatpush1.bf16.xpose.msra.mxu0 0
        %1186 = vmatprep.subr.bf16.mxu0 0
        %1187 = vmatpush1.bf16.xpose.msra.mxu0 0
        %1188 = vmatprep.subr.bf16.mxu0 0
        %1189 = vmatpush1.bf16.xpose.msra.mxu0 0
        %1190 = vmatprep.subr.bf16.mxu0 0
        %1191 = vmatpush1.bf16.xpose.msra.mxu0 0
        %1192 = vmatprep.subr.bf16.mxu0 0
        %1193 = vmatpush1.bf16.xpose.msra.mxu0 0
        %1194 = vmatprep.subr.bf16.mxu0 0
        %1195 = vmatpush1.bf16.xpose.msra.mxu0 %v1178
        %1196 = vmatprep.subr.bf16.mxu0 0
        %1197 = vmatpush2.bf16.xpose.msra.mxu0 0
        %1198 = vmatprep.subr.bf16.mxu0 0
        %1199 = vmatpush2.bf16.xpose.msra.mxu0 0
        %1200 = vmatprep.subr.bf16.mxu0 0
        %1201 = vmatpush2.bf16.xpose.msra.mxu0 0
        %1202 = vmatprep.subr.bf16.mxu0 0
        %1203 = vmatpush2.bf16.xpose.msra.mxu0 0
        %1204 = vmatprep.subr.bf16.mxu0 0
        %1205 = vmatpush2.bf16.xpose.msra.mxu0 0
        %1206 = vmatprep.subr.bf16.mxu0 0
        %1207 = vmatpush2.bf16.xpose.msra.mxu0 0
        %1208 = vmatprep.subr.bf16.mxu0 0
        %1209 = vmatpush2.bf16.xpose.msra.mxu0 0
        %1210 = vmatprep.subr.bf16.mxu0 0
        %1211 = vmatpush2.bf16.xpose.msra.mxu0 0
        %1212 = vmatprep.mubr.bf16.mxu0 0
        %1213 = vmatmul.mubr.bf16.gmra.mxu0 %v1175
        %v1214 = vpop.f32.mrf.mxu0
        %v1215 = vadd.f32 0.0, %v1214
        %v1216 = vpop.f32.mrf.mxu0
        %v1217 = vpop.f32.mrf.mxu0
        %v1218 = vadd.f32 0.0, %v1217
        %v1219 = vpop.f32.mrf.mxu0
        %1220 = vdwg.mxu0
        %v1222 = vsel %vm1173, %v1122, 0
        %v1225 = vsel %vm1173, %v1146, 0
        %1227 = vmatprep.subr.bf16.mxu0 0
        %1228 = vmatpush1.bf16.xpose.msra.mxu0 0
        %1229 = vmatprep.subr.bf16.mxu0 0
        %1230 = vmatpush1.bf16.xpose.msra.mxu0 0
        %1231 = vmatprep.subr.bf16.mxu0 0
        %1232 = vmatpush1.bf16.xpose.msra.mxu0 0
        %1233 = vmatprep.subr.bf16.mxu0 0
        %1234 = vmatpush1.bf16.xpose.msra.mxu0 0
        %1235 = vmatprep.subr.bf16.mxu0 0
        %1236 = vmatpush1.bf16.xpose.msra.mxu0 0
        %1237 = vmatprep.subr.bf16.mxu0 0
        %1238 = vmatpush1.bf16.xpose.msra.mxu0 0
        %1239 = vmatprep.subr.bf16.mxu0 0
        %1240 = vmatpush1.bf16.xpose.msra.mxu0 0
        %1241 = vmatprep.subr.bf16.mxu0 0
        %1242 = vmatpush1.bf16.xpose.msra.mxu0 %v1225
        %1243 = vmatprep.subr.bf16.mxu0 0
        %1244 = vmatpush2.bf16.xpose.msra.mxu0 0
        %1245 = vmatprep.subr.bf16.mxu0 0
        %1246 = vmatpush2.bf16.xpose.msra.mxu0 0
        %1247 = vmatprep.subr.bf16.mxu0 0
        %1248 = vmatpush2.bf16.xpose.msra.mxu0 0
        %1249 = vmatprep.subr.bf16.mxu0 0
        %1250 = vmatpush2.bf16.xpose.msra.mxu0 0
        %1251 = vmatprep.subr.bf16.mxu0 0
        %1252 = vmatpush2.bf16.xpose.msra.mxu0 0
        %1253 = vmatprep.subr.bf16.mxu0 0
        %1254 = vmatpush2.bf16.xpose.msra.mxu0 0
        %1255 = vmatprep.subr.bf16.mxu0 0
        %1256 = vmatpush2.bf16.xpose.msra.mxu0 0
        %1257 = vmatprep.subr.bf16.mxu0 0
        %1258 = vmatpush2.bf16.xpose.msra.mxu0 0
        %1259 = vmatprep.mubr.bf16.mxu0 0
        %1260 = vmatmul.mubr.bf16.gmra.mxu0 %v1222
        %v1261 = vpop.f32.mrf.mxu0
        %v1262 = vadd.f32 0.0, %v1261
        %v1263 = vpop.f32.mrf.mxu0
        %v1264 = vpop.f32.mrf.mxu0
        %v1265 = vadd.f32 0.0, %v1264
        %v1266 = vpop.f32.mrf.mxu0
        %1267 = vdwg.mxu0
        %v1269 = vsel %vm1173, %v1123, 0
        %v1272 = vsel %vm1173, %v1147, 0
        %1274 = vmatprep.subr.bf16.mxu0 0
        %1275 = vmatpush1.bf16.xpose.msra.mxu0 0
        %1276 = vmatprep.subr.bf16.mxu0 0
        %1277 = vmatpush1.bf16.xpose.msra.mxu0 0
        %1278 = vmatprep.subr.bf16.mxu0 0
        %1279 = vmatpush1.bf16.xpose.msra.mxu0 0
        %1280 = vmatprep.subr.bf16.mxu0 0
        %1281 = vmatpush1.bf16.xpose.msra.mxu0 0
        %1282 = vmatprep.subr.bf16.mxu0 0
        %1283 = vmatpush1.bf16.xpose.msra.mxu0 0
        %1284 = vmatprep.subr.bf16.mxu0 0
        %1285 = vmatpush1.bf16.xpose.msra.mxu0 0
        %1286 = vmatprep.subr.bf16.mxu0 0
        %1287 = vmatpush1.bf16.xpose.msra.mxu0 0
        %1288 = vmatprep.subr.bf16.mxu0 0
        %1289 = vmatpush1.bf16.xpose.msra.mxu0 %v1272
        %1290 = vmatprep.subr.bf16.mxu0 0
        %1291 = vmatpush2.bf16.xpose.msra.mxu0 0
        %1292 = vmatprep.subr.bf16.mxu0 0
        %1293 = vmatpush2.bf16.xpose.msra.mxu0 0
        %1294 = vmatprep.subr.bf16.mxu0 0
        %1295 = vmatpush2.bf16.xpose.msra.mxu0 0
        %1296 = vmatprep.subr.bf16.mxu0 0
        %1297 = vmatpush2.bf16.xpose.msra.mxu0 0
        %1298 = vmatprep.subr.bf16.mxu0 0
        %1299 = vmatpush2.bf16.xpose.msra.mxu0 0
        %1300 = vmatprep.subr.bf16.mxu0 0
        %1301 = vmatpush2.bf16.xpose.msra.mxu0 0
        %1302 = vmatprep.subr.bf16.mxu0 0
        %1303 = vmatpush2.bf16.xpose.msra.mxu0 0
        %1304 = vmatprep.subr.bf16.mxu0 0
        %1305 = vmatpush2.bf16.xpose.msra.mxu0 0
        %1306 = vmatprep.mubr.bf16.mxu0 0
        %1307 = vmatmul.mubr.bf16.gmra.mxu0 %v1269
        %v1308 = vpop.f32.mrf.mxu0
        %v1309 = vadd.f32 0.0, %v1308
        %v1310 = vpop.f32.mrf.mxu0
        %v1311 = vpop.f32.mrf.mxu0
        %v1312 = vadd.f32 0.0, %v1311
        %v1313 = vpop.f32.mrf.mxu0
        %1314 = vdwg.mxu0
        %v1316 = vsel %vm1173, %v1124, 0
        %v1319 = vsel %vm1173, %v1148, 0
        %1321 = vmatprep.subr.bf16.mxu0 0
        %1322 = vmatpush1.bf16.xpose.msra.mxu0 0
        %1323 = vmatprep.subr.bf16.mxu0 0
        %1324 = vmatpush1.bf16.xpose.msra.mxu0 0
        %1325 = vmatprep.subr.bf16.mxu0 0
        %1326 = vmatpush1.bf16.xpose.msra.mxu0 0
        %1327 = vmatprep.subr.bf16.mxu0 0
        %1328 = vmatpush1.bf16.xpose.msra.mxu0 0
        %1329 = vmatprep.subr.bf16.mxu0 0
        %1330 = vmatpush1.bf16.xpose.msra.mxu0 0
        %1331 = vmatprep.subr.bf16.mxu0 0
        %1332 = vmatpush1.bf16.xpose.msra.mxu0 0
        %1333 = vmatprep.subr.bf16.mxu0 0
        %1334 = vmatpush1.bf16.xpose.msra.mxu0 0
        %1335 = vmatprep.subr.bf16.mxu0 0
        %1336 = vmatpush1.bf16.xpose.msra.mxu0 %v1319
        %1337 = vmatprep.subr.bf16.mxu0 0
        %1338 = vmatpush2.bf16.xpose.msra.mxu0 0
        %1339 = vmatprep.subr.bf16.mxu0 0
        %1340 = vmatpush2.bf16.xpose.msra.mxu0 0
        %1341 = vmatprep.subr.bf16.mxu0 0
        %1342 = vmatpush2.bf16.xpose.msra.mxu0 0
        %1343 = vmatprep.subr.bf16.mxu0 0
        %1344 = vmatpush2.bf16.xpose.msra.mxu0 0
        %1345 = vmatprep.subr.bf16.mxu0 0
        %1346 = vmatpush2.bf16.xpose.msra.mxu0 0
        %1347 = vmatprep.subr.bf16.mxu0 0
        %1348 = vmatpush2.bf16.xpose.msra.mxu0 0
        %1349 = vmatprep.subr.bf16.mxu0 0
        %1350 = vmatpush2.bf16.xpose.msra.mxu0 0
        %1351 = vmatprep.subr.bf16.mxu0 0
        %1352 = vmatpush2.bf16.xpose.msra.mxu0 0
        %1353 = vmatprep.mubr.bf16.mxu0 0
        %1354 = vmatmul.mubr.bf16.gmra.mxu0 %v1316
        %v1355 = vpop.f32.mrf.mxu0
        %v1356 = vadd.f32 0.0, %v1355
        %v1357 = vpop.f32.mrf.mxu0
        %v1358 = vpop.f32.mrf.mxu0
        %v1359 = vadd.f32 0.0, %v1358
        %v1360 = vpop.f32.mrf.mxu0
        %1361 = vdwg.mxu0
        %v1362 = vmul.f32 %v1215, 0.17677669
        %v1363 = vmul.f32 %v1218, 0.17677669
        %v1364 = vmul.f32 %v1262, 0.17677669
        %v1365 = vmul.f32 %v1265, 0.17677669
        %v1366 = vmul.f32 %v1309, 0.17677669
        %v1367 = vmul.f32 %v1312, 0.17677669
        %v1368 = vmul.f32 %v1356, 0.17677669
        %v1369 = vmul.f32 %v1359, 0.17677669
        %vm1370 = vcmask 130048
        %v1371 = vsel %vm1370, %v1362, -inf
        %1372 = vmax.xlane.f32.xlu0 %v1371
        %v1373 = vpop.xlane.xlu0 %1372
        %v1374 = vsel %vm1370, %v1363, -inf
        %1375 = vmax.xlane.f32.xlu0 %v1374
        %v1376 = vpop.xlane.xlu0 %1375
        %v1377 = vsel %vm1370, %v1364, -inf
        %1378 = vmax.xlane.f32.xlu0 %v1377
        %v1379 = vpop.xlane.xlu0 %1378
        %v1380 = vsel %vm1370, %v1365, -inf
        %1381 = vmax.xlane.f32.xlu0 %v1380
        %v1382 = vpop.xlane.xlu0 %1381
        %v1383 = vsel %vm1370, %v1366, -inf
        %1384 = vmax.xlane.f32.xlu0 %v1383
        %v1385 = vpop.xlane.xlu0 %1384
        %v1386 = vsel %vm1370, %v1367, -inf
        %1387 = vmax.xlane.f32.xlu0 %v1386
        %v1388 = vpop.xlane.xlu0 %1387
        %v1389 = vsel %vm1370, %v1368, -inf
        %1390 = vmax.xlane.f32.xlu0 %v1389
        %v1391 = vpop.xlane.xlu0 %1390
        %v1392 = vsel %vm1370, %v1369, -inf
        %1393 = vmax.xlane.f32.xlu0 %v1392
        %v1394 = vpop.xlane.xlu0 %1393
        %v1395 = vsub.f32 %v1362, %v1373
        %v1396 = vsub.f32 %v1363, %v1376
        %v1397 = vsub.f32 %v1364, %v1379
        %v1398 = vsub.f32 %v1365, %v1382
        %v1399 = vsub.f32 %v1366, %v1385
        %v1400 = vsub.f32 %v1367, %v1388
        %v1401 = vsub.f32 %v1368, %v1391
        %v1402 = vsub.f32 %v1369, %v1394
        %v1403 = vmul.f32 %v1395, 1.442695
        %v1404 = vpow.pop %v1403
        %v1405 = vmul.f32 %v1396, 1.442695
        %v1406 = vpow.pop %v1405
        %v1407 = vmul.f32 %v1397, 1.442695
        %v1408 = vpow.pop %v1407
        %v1409 = vmul.f32 %v1398, 1.442695
        %v1410 = vpow.pop %v1409
        %v1411 = vmul.f32 %v1399, 1.442695
        %v1412 = vpow.pop %v1411
        %v1413 = vmul.f32 %v1400, 1.442695
        %v1414 = vpow.pop %v1413
        %v1415 = vmul.f32 %v1401, 1.442695
        %v1416 = vpow.pop %v1415
        %v1417 = vmul.f32 %v1402, 1.442695
        %v1418 = vpow.pop %v1417
        %v1419 = vsel %vm1370, %v1404, 0.0
        %1420 = vadd.xlane.f32.xlu0 %v1419
        %v1421 = vpop.xlane.xlu0 %1420
        %v1422 = vsel %vm1370, %v1406, 0.0
        %1423 = vadd.xlane.f32.xlu0 %v1422
        %v1424 = vpop.xlane.xlu0 %1423
        %v1425 = vsel %vm1370, %v1408, 0.0
        %1426 = vadd.xlane.f32.xlu0 %v1425
        %v1427 = vpop.xlane.xlu0 %1426
        %v1428 = vsel %vm1370, %v1410, 0.0
        %1429 = vadd.xlane.f32.xlu0 %v1428
        %v1430 = vpop.xlane.xlu0 %1429
        %v1431 = vsel %vm1370, %v1412, 0.0
        %1432 = vadd.xlane.f32.xlu0 %v1431
        %v1433 = vpop.xlane.xlu0 %1432
        %v1434 = vsel %vm1370, %v1414, 0.0
        %1435 = vadd.xlane.f32.xlu0 %v1434
        %v1436 = vpop.xlane.xlu0 %1435
        %v1437 = vsel %vm1370, %v1416, 0.0
        %1438 = vadd.xlane.f32.xlu0 %v1437
        %v1439 = vpop.xlane.xlu0 %1438
        %v1440 = vsel %vm1370, %v1418, 0.0
        %1441 = vadd.xlane.f32.xlu0 %v1440
        %v1442 = vpop.xlane.xlu0 %1441
        %v1443 = vrcp.pop %v1421
        %v1444 = vrcp.pop %v1424
        %v1445 = vrcp.pop %v1427
        %v1446 = vrcp.pop %v1430
        %v1447 = vrcp.pop %v1433
        %v1448 = vrcp.pop %v1436
        %v1449 = vrcp.pop %v1439
        %v1450 = vrcp.pop %v1442
        %v1451 = vmul.f32 %v1404, %v1443
        %v1452 = vmul.f32 %v1406, %v1444
        %v1453 = vmul.f32 %v1408, %v1445
        %v1454 = vmul.f32 %v1410, %v1446
        %v1455 = vmul.f32 %v1412, %v1447
        %v1456 = vmul.f32 %v1414, %v1448
        %v1457 = vmul.f32 %v1416, %v1449
        %v1458 = vmul.f32 %v1418, %v1450
        %v1459 = vpack.c.bf16 %v1452, %v1451
        %v1460 = vpack.c.bf16 %v1454, %v1453
        %v1461 = vpack.c.bf16 %v1456, %v1455
        %v1462 = vpack.c.bf16 %v1458, %v1457
        %v1464 = vsel %vm1370, %v1459, 0
        %1466 = vmatprep.subr.bf16.mxu0 0
        %1467 = vmatpush1.bf16.msra.mxu0 0
        %1468 = vmatprep.subr.bf16.mxu0 0
        %1469 = vmatpush1.bf16.msra.mxu0 0
        %1470 = vmatprep.subr.bf16.mxu0 0
        %1471 = vmatpush1.bf16.msra.mxu0 0
        %1472 = vmatprep.subr.bf16.mxu0 0
        %1473 = vmatpush1.bf16.msra.mxu0 0
        %1474 = vmatprep.subr.bf16.mxu0 0
        %1475 = vmatpush1.bf16.msra.mxu0 0
        %1476 = vmatprep.subr.bf16.mxu0 0
        %1477 = vmatpush1.bf16.msra.mxu0 0
        %1478 = vmatprep.subr.bf16.mxu0 0
        %1479 = vmatpush1.bf16.msra.mxu0 0
        %1480 = vmatprep.subr.bf16.mxu0 0
        %1481 = vmatpush1.bf16.msra.mxu0 %v1169
        %1482 = vmatprep.subr.bf16.mxu0 0
        %1483 = vmatpush2.bf16.msra.mxu0 0
        %1484 = vmatprep.subr.bf16.mxu0 0
        %1485 = vmatpush2.bf16.msra.mxu0 0
        %1486 = vmatprep.subr.bf16.mxu0 0
        %1487 = vmatpush2.bf16.msra.mxu0 0
        %1488 = vmatprep.subr.bf16.mxu0 0
        %1489 = vmatpush2.bf16.msra.mxu0 0
        %1490 = vmatprep.subr.bf16.mxu0 0
        %1491 = vmatpush2.bf16.msra.mxu0 0
        %1492 = vmatprep.subr.bf16.mxu0 0
        %1493 = vmatpush2.bf16.msra.mxu0 0
        %1494 = vmatprep.subr.bf16.mxu0 0
        %1495 = vmatpush2.bf16.msra.mxu0 0
        %1496 = vmatprep.subr.bf16.mxu0 0
        %1497 = vmatpush2.bf16.msra.mxu0 0
        %1498 = vmatprep.mubr.bf16.mxu0 0
        %1499 = vmatmul.mubr.bf16.gmra.mxu0 %v1464
        %v1500 = vpop.f32.mrf.mxu0
        %v1501 = vadd.f32 0.0, %v1500
        %v1502 = vpop.f32.mrf.mxu0
        %v1503 = vpop.f32.mrf.mxu0
        %v1504 = vadd.f32 0.0, %v1503
        %v1505 = vpop.f32.mrf.mxu0
        %1506 = vdwg.mxu0
        %v1508 = vsel %vm1370, %v1460, 0
        %1510 = vmatprep.subr.bf16.mxu0 0
        %1511 = vmatpush1.bf16.msra.mxu0 0
        %1512 = vmatprep.subr.bf16.mxu0 0
        %1513 = vmatpush1.bf16.msra.mxu0 0
        %1514 = vmatprep.subr.bf16.mxu0 0
        %1515 = vmatpush1.bf16.msra.mxu0 0
        %1516 = vmatprep.subr.bf16.mxu0 0
        %1517 = vmatpush1.bf16.msra.mxu0 0
        %1518 = vmatprep.subr.bf16.mxu0 0
        %1519 = vmatpush1.bf16.msra.mxu0 0
        %1520 = vmatprep.subr.bf16.mxu0 0
        %1521 = vmatpush1.bf16.msra.mxu0 0
        %1522 = vmatprep.subr.bf16.mxu0 0
        %1523 = vmatpush1.bf16.msra.mxu0 0
        %1524 = vmatprep.subr.bf16.mxu0 0
        %1525 = vmatpush1.bf16.msra.mxu0 %v1170
        %1526 = vmatprep.subr.bf16.mxu0 0
        %1527 = vmatpush2.bf16.msra.mxu0 0
        %1528 = vmatprep.subr.bf16.mxu0 0
        %1529 = vmatpush2.bf16.msra.mxu0 0
        %1530 = vmatprep.subr.bf16.mxu0 0
        %1531 = vmatpush2.bf16.msra.mxu0 0
        %1532 = vmatprep.subr.bf16.mxu0 0
        %1533 = vmatpush2.bf16.msra.mxu0 0
        %1534 = vmatprep.subr.bf16.mxu0 0
        %1535 = vmatpush2.bf16.msra.mxu0 0
        %1536 = vmatprep.subr.bf16.mxu0 0
        %1537 = vmatpush2.bf16.msra.mxu0 0
        %1538 = vmatprep.subr.bf16.mxu0 0
        %1539 = vmatpush2.bf16.msra.mxu0 0
        %1540 = vmatprep.subr.bf16.mxu0 0
        %1541 = vmatpush2.bf16.msra.mxu0 0
        %1542 = vmatprep.mubr.bf16.mxu0 0
        %1543 = vmatmul.mubr.bf16.gmra.mxu0 %v1508
        %v1544 = vpop.f32.mrf.mxu0
        %v1545 = vadd.f32 0.0, %v1544
        %v1546 = vpop.f32.mrf.mxu0
        %v1547 = vpop.f32.mrf.mxu0
        %v1548 = vadd.f32 0.0, %v1547
        %v1549 = vpop.f32.mrf.mxu0
        %1550 = vdwg.mxu0
        %v1552 = vsel %vm1370, %v1461, 0
        %1554 = vmatprep.subr.bf16.mxu0 0
        %1555 = vmatpush1.bf16.msra.mxu0 0
        %1556 = vmatprep.subr.bf16.mxu0 0
        %1557 = vmatpush1.bf16.msra.mxu0 0
        %1558 = vmatprep.subr.bf16.mxu0 0
        %1559 = vmatpush1.bf16.msra.mxu0 0
        %1560 = vmatprep.subr.bf16.mxu0 0
        %1561 = vmatpush1.bf16.msra.mxu0 0
        %1562 = vmatprep.subr.bf16.mxu0 0
        %1563 = vmatpush1.bf16.msra.mxu0 0
        %1564 = vmatprep.subr.bf16.mxu0 0
        %1565 = vmatpush1.bf16.msra.mxu0 0
        %1566 = vmatprep.subr.bf16.mxu0 0
        %1567 = vmatpush1.bf16.msra.mxu0 0
        %1568 = vmatprep.subr.bf16.mxu0 0
        %1569 = vmatpush1.bf16.msra.mxu0 %v1171
        %1570 = vmatprep.subr.bf16.mxu0 0
        %1571 = vmatpush2.bf16.msra.mxu0 0
        %1572 = vmatprep.subr.bf16.mxu0 0
        %1573 = vmatpush2.bf16.msra.mxu0 0
        %1574 = vmatprep.subr.bf16.mxu0 0
        %1575 = vmatpush2.bf16.msra.mxu0 0
        %1576 = vmatprep.subr.bf16.mxu0 0
        %1577 = vmatpush2.bf16.msra.mxu0 0
        %1578 = vmatprep.subr.bf16.mxu0 0
        %1579 = vmatpush2.bf16.msra.mxu0 0
        %1580 = vmatprep.subr.bf16.mxu0 0
        %1581 = vmatpush2.bf16.msra.mxu0 0
        %1582 = vmatprep.subr.bf16.mxu0 0
        %1583 = vmatpush2.bf16.msra.mxu0 0
        %1584 = vmatprep.subr.bf16.mxu0 0
        %1585 = vmatpush2.bf16.msra.mxu0 0
        %1586 = vmatprep.mubr.bf16.mxu0 0
        %1587 = vmatmul.mubr.bf16.gmra.mxu0 %v1552
        %v1588 = vpop.f32.mrf.mxu0
        %v1589 = vadd.f32 0.0, %v1588
        %v1590 = vpop.f32.mrf.mxu0
        %v1591 = vpop.f32.mrf.mxu0
        %v1592 = vadd.f32 0.0, %v1591
        %v1593 = vpop.f32.mrf.mxu0
        %1594 = vdwg.mxu0
        %v1596 = vsel %vm1370, %v1462, 0
        %1598 = vmatprep.subr.bf16.mxu0 0
        %1599 = vmatpush1.bf16.msra.mxu0 0
        %1600 = vmatprep.subr.bf16.mxu0 0
        %1601 = vmatpush1.bf16.msra.mxu0 0
        %1602 = vmatprep.subr.bf16.mxu0 0
        %1603 = vmatpush1.bf16.msra.mxu0 0
        %1604 = vmatprep.subr.bf16.mxu0 0
        %1605 = vmatpush1.bf16.msra.mxu0 0
        %1606 = vmatprep.subr.bf16.mxu0 0
        %1607 = vmatpush1.bf16.msra.mxu0 0
        %1608 = vmatprep.subr.bf16.mxu0 0
        %1609 = vmatpush1.bf16.msra.mxu0 0
        %1610 = vmatprep.subr.bf16.mxu0 0
        %1611 = vmatpush1.bf16.msra.mxu0 0
        %1612 = vmatprep.subr.bf16.mxu0 0
        %1613 = vmatpush1.bf16.msra.mxu0 %v1172
        %1614 = vmatprep.subr.bf16.mxu0 0
        %1615 = vmatpush2.bf16.msra.mxu0 0
        %1616 = vmatprep.subr.bf16.mxu0 0
        %1617 = vmatpush2.bf16.msra.mxu0 0
        %1618 = vmatprep.subr.bf16.mxu0 0
        %1619 = vmatpush2.bf16.msra.mxu0 0
        %1620 = vmatprep.subr.bf16.mxu0 0
        %1621 = vmatpush2.bf16.msra.mxu0 0
        %1622 = vmatprep.subr.bf16.mxu0 0
        %1623 = vmatpush2.bf16.msra.mxu0 0
        %1624 = vmatprep.subr.bf16.mxu0 0
        %1625 = vmatpush2.bf16.msra.mxu0 0
        %1626 = vmatprep.subr.bf16.mxu0 0
        %1627 = vmatpush2.bf16.msra.mxu0 0
        %1628 = vmatprep.subr.bf16.mxu0 0
        %1629 = vmatpush2.bf16.msra.mxu0 0
        %1630 = vmatprep.mubr.bf16.mxu0 0
        %1631 = vmatmul.mubr.bf16.gmra.mxu0 %v1596
        %v1632 = vpop.f32.mrf.mxu0
        %v1633 = vadd.f32 0.0, %v1632
        %v1634 = vpop.f32.mrf.mxu0
        %v1635 = vpop.f32.mrf.mxu0
        %v1636 = vadd.f32 0.0, %v1635
        %v1637 = vpop.f32.mrf.mxu0
        %1638 = vdwg.mxu0
        %1641 = vrot.lane.b32.xlu0 %v1545, 32
        %v1642 = vpop.permute.xlu0 %1641
        %1643 = vrot.lane.b32.xlu0 %v1548, 32
        %v1644 = vpop.permute.xlu0 %1643
        %1649 = vrot.lane.b32.xlu0 %v1589, 64
        %v1650 = vpop.permute.xlu0 %1649
        %1651 = vrot.lane.b32.xlu0 %v1592, 64
        %v1652 = vpop.permute.xlu0 %1651
        %1657 = vrot.lane.b32.xlu0 %v1633, 96
        %v1658 = vpop.permute.xlu0 %1657
        %1659 = vrot.lane.b32.xlu0 %v1636, 96
        %v1660 = vpop.permute.xlu0 %1659
        %v1663 = vsel %vm1173, %v1501, %v1642
        %v1664 = vsel %vm1173, %v1504, %v1644
        %vm1665 = vcmask 523264
        %v1666 = vsel %vm1665, %v1663, %v1650
        %v1667 = vsel %vm1665, %v1664, %v1652
        %vm1668 = vcmask 785408
        %v1669 = vsel %vm1668, %v1666, %v1658
        %v1670 = vsel %vm1668, %v1667, %v1660
        %v1671 = vpack.c.bf16 %v1670, %v1669
        %v1672 = vld [vmem:[#allocation13] sm:$0xf]
        %v1673 = vld [vmem:[#allocation13 + $0x4] sm:$0xf]
        %v1674 = vld [vmem:[#allocation13 + $0x8] sm:$0xf]
        %v1675 = vld [vmem:[#allocation13 + $0xc] sm:$0xf]
        %v1676 = vld [vmem:[#allocation13 + $0x10] sm:$0xf]
        %v1677 = vld [vmem:[#allocation13 + $0x14] sm:$0xf]
        %v1678 = vld [vmem:[#allocation13 + $0x18] sm:$0xf]
        %v1679 = vld [vmem:[#allocation13 + $0x1c] sm:$0xf]
        %v1680 = vld [vmem:[#allocation13 + $0x20] sm:$0xf]
        %v1681 = vld [vmem:[#allocation13 + $0x24] sm:$0xf]
        %v1682 = vld [vmem:[#allocation13 + $0x28] sm:$0xf]
        %v1683 = vld [vmem:[#allocation13 + $0x2c] sm:$0xf]
        %v1684 = vld [vmem:[#allocation13 + $0x30] sm:$0xf]
        %v1685 = vld [vmem:[#allocation13 + $0x34] sm:$0xf]
        %v1686 = vld [vmem:[#allocation13 + $0x38] sm:$0xf]
        %v1687 = vld [vmem:[#allocation13 + $0x3c] sm:$0xf]
        %v1688 = vld [vmem:[%s8] sm:$0x1]
        %v1690 = vlaneseq
        %v1691 = vshrl.u32 %v1690, 7
        %v1692 = vsub.s32 0, %v1691
        %v1693 = vrot.slane %v1688, %v1692
        %v1711 = vunpack.c.l.b16 %v1672
        %v1712 = vunpack.c.l.b16 %v1673
        %v1713 = vunpack.c.l.b16 %v1674
        %v1714 = vunpack.c.l.b16 %v1675
        %v1715 = vunpack.c.l.b16 %v1676
        %v1716 = vunpack.c.l.b16 %v1677
        %v1717 = vunpack.c.l.b16 %v1678
        %v1718 = vunpack.c.l.b16 %v1679
        %v1719 = vunpack.c.l.b16 %v1680
        %v1720 = vunpack.c.l.b16 %v1681
        %v1721 = vunpack.c.l.b16 %v1682
        %v1722 = vunpack.c.l.b16 %v1683
        %v1723 = vunpack.c.l.b16 %v1684
        %v1724 = vunpack.c.l.b16 %v1685
        %v1725 = vunpack.c.l.b16 %v1686
        %v1726 = vunpack.c.l.b16 %v1687
        %v1727 = vpack.c.b16 %v1712, %v1711
        %v1728 = vpack.c.b16 %v1714, %v1713
        %v1729 = vpack.c.b16 %v1716, %v1715
        %v1730 = vpack.c.b16 %v1718, %v1717
        %v1731 = vpack.c.b16 %v1720, %v1719
        %v1732 = vpack.c.b16 %v1722, %v1721
        %v1733 = vpack.c.b16 %v1724, %v1723
        %v1734 = vpack.c.b16 %v1726, %v1725
        %1743 = vmatprep.subr.bf16.mxu0 0
        %1744 = vmatpush1.bf16.msra.mxu0 %v1734
        %1745 = vmatprep.subr.bf16.mxu0 0
        %1746 = vmatpush1.bf16.msra.mxu0 %v1733
        %1747 = vmatprep.subr.bf16.mxu0 0
        %1748 = vmatpush1.bf16.msra.mxu0 %v1732
        %1749 = vmatprep.subr.bf16.mxu0 0
        %1750 = vmatpush1.bf16.msra.mxu0 %v1731
        %1751 = vmatprep.subr.bf16.mxu0 0
        %1752 = vmatpush1.bf16.msra.mxu0 %v1730
        %1753 = vmatprep.subr.bf16.mxu0 0
        %1754 = vmatpush1.bf16.msra.mxu0 %v1729
        %1755 = vmatprep.subr.bf16.mxu0 0
        %1756 = vmatpush1.bf16.msra.mxu0 %v1728
        %1757 = vmatprep.subr.bf16.mxu0 0
        %1758 = vmatpush1.bf16.msra.mxu0 %v1727
        %1759 = vmatprep.subr.bf16.mxu0 0
        %1760 = vmatpush2.bf16.msra.mxu0 0
        %1761 = vmatprep.subr.bf16.mxu0 0
        %1762 = vmatpush2.bf16.msra.mxu0 0
        %1763 = vmatprep.subr.bf16.mxu0 0
        %1764 = vmatpush2.bf16.msra.mxu0 0
        %1765 = vmatprep.subr.bf16.mxu0 0
        %1766 = vmatpush2.bf16.msra.mxu0 0
        %1767 = vmatprep.subr.bf16.mxu0 0
        %1768 = vmatpush2.bf16.msra.mxu0 0
        %1769 = vmatprep.subr.bf16.mxu0 0
        %1770 = vmatpush2.bf16.msra.mxu0 0
        %1771 = vmatprep.subr.bf16.mxu0 0
        %1772 = vmatpush2.bf16.msra.mxu0 0
        %1773 = vmatprep.subr.bf16.mxu0 0
        %1774 = vmatpush2.bf16.msra.mxu0 0
        %1775 = vmatprep.mubr.bf16.mxu0 0
        %1776 = vmatmul.mubr.bf16.gmra.mxu0 %v1671
        %v1777 = vpop.f32.mrf.mxu0
        %v1778 = vadd.f32 %v1693, %v1777
        %v1779 = vpop.f32.mrf.mxu0
        %v1780 = vpop.f32.mrf.mxu0
        %v1781 = vadd.f32 %v1693, %v1780
        %v1782 = vpop.f32.mrf.mxu0
        %1783 = vdwg.mxu0
        %v1784 = vadd.f32 %v792, %v1778
        %v1785 = vadd.f32 %v795, %v1781
        %v1786 = vld [vmem:[%s9] sm:$0x1]
        %v1787 = vld [vmem:[%s10] sm:$0x1]
        %1788 = vadd.xlane.f32.xlu0 %v1784
        %v1789 = vpop.xlane.xlu0 %1788
        %1790 = vadd.xlane.f32.xlu0 %v1785
        %v1791 = vpop.xlane.xlu0 %1790
        %v1792 = vmul.f32 %v1789, %v804
        %v1793 = vmul.f32 %v1791, %v804
        %v1794 = vsub.f32 %v1784, %v1792
        %v1795 = vsub.f32 %v1785, %v1793
        %v1796 = vmul.f32 %v1794, %v1794
        %v1797 = vmul.f32 %v1795, %v1795
        %1798 = vadd.xlane.f32.xlu0 %v1796
        %v1799 = vpop.xlane.xlu0 %1798
        %1800 = vadd.xlane.f32.xlu0 %v1797
        %v1801 = vpop.xlane.xlu0 %1800
        %v1802 = vmul.f32 %v1799, %v804
        %v1803 = vmul.f32 %v1801, %v804
        %v1804 = vadd.f32 %v1802, 1e-05
        %v1805 = vadd.f32 %v1803, 1e-05
        %v1806 = vrsqrt.pop %v1804
        %v1807 = vrsqrt.pop %v1805
        %v1808 = vmul.f32 %v1794, %v1806
        %v1809 = vmul.f32 %v1795, %v1807
        %v1811 = vlaneseq
        %v1812 = vshrl.u32 %v1811, 7
        %v1813 = vsub.s32 0, %v1812
        %v1814 = vrot.slane %v1786, %v1813
        %v1816 = vmul.f32 %v1808, %v1814
        %v1817 = vmul.f32 %v1809, %v1814
        %v1819 = vlaneseq
        %v1820 = vshrl.u32 %v1819, 7
        %v1821 = vsub.s32 0, %v1820
        %v1822 = vrot.slane %v1787, %v1821
        %v1824 = vadd.f32 %v1816, %v1822
        %v1825 = vadd.f32 %v1817, %v1822
        %v1826 = vpack.c.bf16 %v1825, %v1824
        %v1827 = vld [vmem:[#allocation14] sm:$0xff]
        %v1828 = vld [vmem:[#allocation14 + $0x8] sm:$0xff]
        %v1829 = vld [vmem:[#allocation14 + $0x10] sm:$0xff]
        %v1830 = vld [vmem:[#allocation14 + $0x18] sm:$0xff]
        %v1831 = vld [vmem:[#allocation14 + $0x20] sm:$0xff]
        %v1832 = vld [vmem:[#allocation14 + $0x28] sm:$0xff]
        %v1833 = vld [vmem:[#allocation14 + $0x30] sm:$0xff]
        %v1834 = vld [vmem:[#allocation14 + $0x38] sm:$0xff]
        %v1835 = vld [vmem:[#allocation14 + $0x40] sm:$0xff]
        %v1836 = vld [vmem:[#allocation14 + $0x48] sm:$0xff]
        %v1837 = vld [vmem:[#allocation14 + $0x50] sm:$0xff]
        %v1838 = vld [vmem:[#allocation14 + $0x58] sm:$0xff]
        %v1839 = vld [vmem:[#allocation14 + $0x60] sm:$0xff]
        %v1840 = vld [vmem:[#allocation14 + $0x68] sm:$0xff]
        %v1841 = vld [vmem:[#allocation14 + $0x70] sm:$0xff]
        %v1842 = vld [vmem:[#allocation14 + $0x78] sm:$0xff]
        %v1843 = vld [vmem:[#allocation14 + $0x80] sm:$0xff]
        %v1844 = vld [vmem:[#allocation14 + $0x88] sm:$0xff]
        %v1845 = vld [vmem:[#allocation14 + $0x90] sm:$0xff]
        %v1846 = vld [vmem:[#allocation14 + $0x98] sm:$0xff]
        %v1847 = vld [vmem:[#allocation14 + $0xa0] sm:$0xff]
        %v1848 = vld [vmem:[#allocation14 + $0xa8] sm:$0xff]
        %v1849 = vld [vmem:[#allocation14 + $0xb0] sm:$0xff]
        %v1850 = vld [vmem:[#allocation14 + $0xb8] sm:$0xff]
        %v1851 = vld [vmem:[#allocation14 + $0xc0] sm:$0xff]
        %v1852 = vld [vmem:[#allocation14 + $0xc8] sm:$0xff]
        %v1853 = vld [vmem:[#allocation14 + $0xd0] sm:$0xff]
        %v1854 = vld [vmem:[#allocation14 + $0xd8] sm:$0xff]
        %v1855 = vld [vmem:[#allocation14 + $0xe0] sm:$0xff]
        %v1856 = vld [vmem:[#allocation14 + $0xe8] sm:$0xff]
        %v1857 = vld [vmem:[#allocation14 + $0xf0] sm:$0xff]
        %v1858 = vld [vmem:[#allocation14 + $0xf8] sm:$0xff]
        %v1859 = vld [vmem:[%s12] sm:$0xf]
        %v1861 = vlaneseq
        %v1862 = vshrl.u32 %v1861, 7
        %v1863 = vsub.s32 0, %v1862
        %v1864 = vrot.slane %v1859, %v1863
        %v1865 = vlaneseq
        %v1866 = vshrl.u32 %v1865, 7
        %v1867 = vsub.s32 1, %v1866
        %v1868 = vrot.slane %v1859, %v1867
        %v1869 = vlaneseq
        %v1870 = vshrl.u32 %v1869, 7
        %v1871 = vsub.s32 2, %v1870
        %v1872 = vrot.slane %v1859, %v1871
        %v1873 = vlaneseq
        %v1874 = vshrl.u32 %v1873, 7
        %v1875 = vsub.s32 3, %v1874
        %v1876 = vrot.slane %v1859, %v1875
        %v1913 = vunpack.c.l.b16 %v1827
        %v1914 = vunpack.c.h.b16 %v1827
        %v1915 = vunpack.c.l.b16 %v1828
        %v1916 = vunpack.c.h.b16 %v1828
        %v1917 = vunpack.c.l.b16 %v1829
        %v1918 = vunpack.c.h.b16 %v1829
        %v1919 = vunpack.c.l.b16 %v1830
        %v1920 = vunpack.c.h.b16 %v1830
        %v1921 = vunpack.c.l.b16 %v1831
        %v1922 = vunpack.c.h.b16 %v1831
        %v1923 = vunpack.c.l.b16 %v1832
        %v1924 = vunpack.c.h.b16 %v1832
        %v1925 = vunpack.c.l.b16 %v1833
        %v1926 = vunpack.c.h.b16 %v1833
        %v1927 = vunpack.c.l.b16 %v1834
        %v1928 = vunpack.c.h.b16 %v1834
        %v1929 = vunpack.c.l.b16 %v1835
        %v1930 = vunpack.c.h.b16 %v1835
        %v1931 = vunpack.c.l.b16 %v1836
        %v1932 = vunpack.c.h.b16 %v1836
        %v1933 = vunpack.c.l.b16 %v1837
        %v1934 = vunpack.c.h.b16 %v1837
        %v1935 = vunpack.c.l.b16 %v1838
        %v1936 = vunpack.c.h.b16 %v1838
        %v1937 = vunpack.c.l.b16 %v1839
        %v1938 = vunpack.c.h.b16 %v1839
        %v1939 = vunpack.c.l.b16 %v1840
        %v1940 = vunpack.c.h.b16 %v1840
        %v1941 = vunpack.c.l.b16 %v1841
        %v1942 = vunpack.c.h.b16 %v1841
        %v1943 = vunpack.c.l.b16 %v1842
        %v1944 = vunpack.c.h.b16 %v1842
        %v1945 = vunpack.c.l.b16 %v1843
        %v1946 = vunpack.c.h.b16 %v1843
        %v1947 = vunpack.c.l.b16 %v1844
        %v1948 = vunpack.c.h.b16 %v1844
        %v1949 = vunpack.c.l.b16 %v1845
        %v1950 = vunpack.c.h.b16 %v1845
        %v1951 = vunpack.c.l.b16 %v1846
        %v1952 = vunpack.c.h.b16 %v1846
        %v1953 = vunpack.c.l.b16 %v1847
        %v1954 = vunpack.c.h.b16 %v1847
        %v1955 = vunpack.c.l.b16 %v1848
        %v1956 = vunpack.c.h.b16 %v1848
        %v1957 = vunpack.c.l.b16 %v1849
        %v1958 = vunpack.c.h.b16 %v1849
        %v1959 = vunpack.c.l.b16 %v1850
        %v1960 = vunpack.c.h.b16 %v1850
        %v1961 = vunpack.c.l.b16 %v1851
        %v1962 = vunpack.c.h.b16 %v1851
        %v1963 = vunpack.c.l.b16 %v1852
        %v1964 = vunpack.c.h.b16 %v1852
        %v1965 = vunpack.c.l.b16 %v1853
        %v1966 = vunpack.c.h.b16 %v1853
        %v1967 = vunpack.c.l.b16 %v1854
        %v1968 = vunpack.c.h.b16 %v1854
        %v1969 = vunpack.c.l.b16 %v1855
        %v1970 = vunpack.c.h.b16 %v1855
        %v1971 = vunpack.c.l.b16 %v1856
        %v1972 = vunpack.c.h.b16 %v1856
        %v1973 = vunpack.c.l.b16 %v1857
        %v1974 = vunpack.c.h.b16 %v1857
        %v1975 = vunpack.c.l.b16 %v1858
        %v1976 = vunpack.c.h.b16 %v1858
        %v1977 = vpack.c.b16 %v1917, %v1913
        %v1978 = vpack.c.b16 %v1918, %v1914
        %v1979 = vpack.c.b16 %v1919, %v1915
        %v1980 = vpack.c.b16 %v1920, %v1916
        %v1981 = vpack.c.b16 %v1925, %v1921
        %v1982 = vpack.c.b16 %v1926, %v1922
        %v1983 = vpack.c.b16 %v1927, %v1923
        %v1984 = vpack.c.b16 %v1928, %v1924
        %v1985 = vpack.c.b16 %v1933, %v1929
        %v1986 = vpack.c.b16 %v1934, %v1930
        %v1987 = vpack.c.b16 %v1935, %v1931
        %v1988 = vpack.c.b16 %v1936, %v1932
        %v1989 = vpack.c.b16 %v1941, %v1937
        %v1990 = vpack.c.b16 %v1942, %v1938
        %v1991 = vpack.c.b16 %v1943, %v1939
        %v1992 = vpack.c.b16 %v1944, %v1940
        %v1993 = vpack.c.b16 %v1949, %v1945
        %v1994 = vpack.c.b16 %v1950, %v1946
        %v1995 = vpack.c.b16 %v1951, %v1947
        %v1996 = vpack.c.b16 %v1952, %v1948
        %v1997 = vpack.c.b16 %v1957, %v1953
        %v1998 = vpack.c.b16 %v1958, %v1954
        %v1999 = vpack.c.b16 %v1959, %v1955
        %v2000 = vpack.c.b16 %v1960, %v1956
        %v2001 = vpack.c.b16 %v1965, %v1961
        %v2002 = vpack.c.b16 %v1966, %v1962
        %v2003 = vpack.c.b16 %v1967, %v1963
        %v2004 = vpack.c.b16 %v1968, %v1964
        %v2005 = vpack.c.b16 %v1973, %v1969
        %v2006 = vpack.c.b16 %v1974, %v1970
        %v2007 = vpack.c.b16 %v1975, %v1971
        %v2008 = vpack.c.b16 %v1976, %v1972
        %2041 = vmatprep.subr.bf16.mxu0 %v2006
        %2042 = vmatpush1.bf16.msra.mxu0 %v2005
        %2043 = vmatprep.subr.bf16.mxu0 %v2002
        %2044 = vmatpush1.bf16.msra.mxu0 %v2001
        %2045 = vmatprep.subr.bf16.mxu0 %v1998
        %2046 = vmatpush1.bf16.msra.mxu0 %v1997
        %2047 = vmatprep.subr.bf16.mxu0 %v1994
        %2048 = vmatpush1.bf16.msra.mxu0 %v1993
        %2049 = vmatprep.subr.bf16.mxu0 %v1990
        %2050 = vmatpush1.bf16.msra.mxu0 %v1989
        %2051 = vmatprep.subr.bf16.mxu0 %v1986
        %2052 = vmatpush1.bf16.msra.mxu0 %v1985
        %2053 = vmatprep.subr.bf16.mxu0 %v1982
        %2054 = vmatpush1.bf16.msra.mxu0 %v1981
        %2055 = vmatprep.subr.bf16.mxu0 %v1978
        %2056 = vmatpush1.bf16.msra.mxu0 %v1977
        %2057 = vmatprep.subr.bf16.mxu0 0
        %2058 = vmatpush2.bf16.msra.mxu0 0
        %2059 = vmatprep.subr.bf16.mxu0 0
        %2060 = vmatpush2.bf16.msra.mxu0 0
        %2061 = vmatprep.subr.bf16.mxu0 0
        %2062 = vmatpush2.bf16.msra.mxu0 0
        %2063 = vmatprep.subr.bf16.mxu0 0
        %2064 = vmatpush2.bf16.msra.mxu0 0
        %2065 = vmatprep.subr.bf16.mxu0 0
        %2066 = vmatpush2.bf16.msra.mxu0 0
        %2067 = vmatprep.subr.bf16.mxu0 0
        %2068 = vmatpush2.bf16.msra.mxu0 0
        %2069 = vmatprep.subr.bf16.mxu0 0
        %2070 = vmatpush2.bf16.msra.mxu0 0
        %2071 = vmatprep.subr.bf16.mxu0 0
        %2072 = vmatpush2.bf16.msra.mxu0 0
        %2073 = vmatprep.mubr.bf16.mxu0 0
        %2074 = vmatmul.mubr.bf16.gmra.mxu0 %v1826
        %v2075 = vpop.f32.mrf.mxu0
        %v2076 = vadd.f32 %v1864, %v2075
        %v2077 = vpop.f32.mrf.mxu0
        %v2078 = vadd.f32 %v1868, %v2077
        %v2079 = vpop.f32.mrf.mxu0
        %v2080 = vadd.f32 %v1864, %v2079
        %v2081 = vpop.f32.mrf.mxu0
        %v2082 = vadd.f32 %v1868, %v2081
        %2083 = vdwg.mxu0
        %2084 = vmatprep.subr.bf16.mxu0 %v2008
        %2085 = vmatpush1.bf16.msra.mxu0 %v2007
        %2086 = vmatprep.subr.bf16.mxu0 %v2004
        %2087 = vmatpush1.bf16.msra.mxu0 %v2003
        %2088 = vmatprep.subr.bf16.mxu0 %v2000
        %2089 = vmatpush1.bf16.msra.mxu0 %v1999
        %2090 = vmatprep.subr.bf16.mxu0 %v1996
        %2091 = vmatpush1.bf16.msra.mxu0 %v1995
        %2092 = vmatprep.subr.bf16.mxu0 %v1992
        %2093 = vmatpush1.bf16.msra.mxu0 %v1991
        %2094 = vmatprep.subr.bf16.mxu0 %v1988
        %2095 = vmatpush1.bf16.msra.mxu0 %v1987
        %2096 = vmatprep.subr.bf16.mxu0 %v1984
        %2097 = vmatpush1.bf16.msra.mxu0 %v1983
        %2098 = vmatprep.subr.bf16.mxu0 %v1980
        %2099 = vmatpush1.bf16.msra.mxu0 %v1979
        %2100 = vmatprep.subr.bf16.mxu0 0
        %2101 = vmatpush2.bf16.msra.mxu0 0
        %2102 = vmatprep.subr.bf16.mxu0 0
        %2103 = vmatpush2.bf16.msra.mxu0 0
        %2104 = vmatprep.subr.bf16.mxu0 0
        %2105 = vmatpush2.bf16.msra.mxu0 0
        %2106 = vmatprep.subr.bf16.mxu0 0
        %2107 = vmatpush2.bf16.msra.mxu0 0
        %2108 = vmatprep.subr.bf16.mxu0 0
        %2109 = vmatpush2.bf16.msra.mxu0 0
        %2110 = vmatprep.subr.bf16.mxu0 0
        %2111 = vmatpush2.bf16.msra.mxu0 0
        %2112 = vmatprep.subr.bf16.mxu0 0
        %2113 = vmatpush2.bf16.msra.mxu0 0
        %2114 = vmatprep.subr.bf16.mxu0 0
        %2115 = vmatpush2.bf16.msra.mxu0 0
        %2116 = vmatprep.mubr.bf16.mxu0 0
        %2117 = vmatmul.mubr.bf16.gmra.mxu0 %v1826
        %v2118 = vpop.f32.mrf.mxu0
        %v2119 = vadd.f32 %v1872, %v2118
        %v2120 = vpop.f32.mrf.mxu0
        %v2121 = vadd.f32 %v1876, %v2120
        %v2122 = vpop.f32.mrf.mxu0
        %v2123 = vadd.f32 %v1872, %v2122
        %v2124 = vpop.f32.mrf.mxu0
        %v2125 = vadd.f32 %v1876, %v2124
        %2126 = vdwg.mxu0
        %v2127 = vmul.f32 %v2076, 0.5
        %v2128 = vmul.f32 %v2078, 0.5
        %v2129 = vmul.f32 %v2119, 0.5
        %v2130 = vmul.f32 %v2121, 0.5
        %v2131 = vmul.f32 %v2080, 0.5
        %v2132 = vmul.f32 %v2082, 0.5
        %v2133 = vmul.f32 %v2123, 0.5
        %v2134 = vmul.f32 %v2125, 0.5
        %v2135 = vmul.f32 %v2076, 0.044715
        %v2136 = vmul.f32 %v2078, 0.044715
        %v2137 = vmul.f32 %v2119, 0.044715
        %v2138 = vmul.f32 %v2121, 0.044715
        %v2139 = vmul.f32 %v2080, 0.044715
        %v2140 = vmul.f32 %v2082, 0.044715
        %v2141 = vmul.f32 %v2123, 0.044715
        %v2142 = vmul.f32 %v2125, 0.044715
        %v2143 = vmul.f32 %v2135, %v2076
        %v2144 = vmul.f32 %v2136, %v2078
        %v2145 = vmul.f32 %v2137, %v2119
        %v2146 = vmul.f32 %v2138, %v2121
        %v2147 = vmul.f32 %v2139, %v2080
        %v2148 = vmul.f32 %v2140, %v2082
        %v2149 = vmul.f32 %v2141, %v2123
        %v2150 = vmul.f32 %v2142, %v2125
        %v2151 = vmul.f32 %v2143, %v2076
        %v2152 = vmul.f32 %v2144, %v2078
        %v2153 = vmul.f32 %v2145, %v2119
        %v2154 = vmul.f32 %v2146, %v2121
        %v2155 = vmul.f32 %v2147, %v2080
        %v2156 = vmul.f32 %v2148, %v2082
        %v2157 = vmul.f32 %v2149, %v2123
        %v2158 = vmul.f32 %v2150, %v2125
        %v2159 = vadd.f32 %v2076, %v2151
        %v2160 = vadd.f32 %v2078, %v2152
        %v2161 = vadd.f32 %v2119, %v2153
        %v2162 = vadd.f32 %v2121, %v2154
        %v2163 = vadd.f32 %v2080, %v2155
        %v2164 = vadd.f32 %v2082, %v2156
        %v2165 = vadd.f32 %v2123, %v2157
        %v2166 = vadd.f32 %v2125, %v2158
        %v2167 = vmul.f32 %v2159, 0.7978846
        %v2168 = vmul.f32 %v2160, 0.7978846
        %v2169 = vmul.f32 %v2161, 0.7978846
        %v2170 = vmul.f32 %v2162, 0.7978846
        %v2171 = vmul.f32 %v2163, 0.7978846
        %v2172 = vmul.f32 %v2164, 0.7978846
        %v2173 = vmul.f32 %v2165, 0.7978846
        %v2174 = vmul.f32 %v2166, 0.7978846
        %v2175 = vtanh.pop %v2167
        %v2176 = vtanh.pop %v2168
        %v2177 = vtanh.pop %v2169
        %v2178 = vtanh.pop %v2170
        %v2179 = vtanh.pop %v2171
        %v2180 = vtanh.pop %v2172
        %v2181 = vtanh.pop %v2173
        %v2182 = vtanh.pop %v2174
        %v2183 = vadd.f32 %v2175, 1.0
        %v2184 = vadd.f32 %v2176, 1.0
        %v2185 = vadd.f32 %v2177, 1.0
        %v2186 = vadd.f32 %v2178, 1.0
        %v2187 = vadd.f32 %v2179, 1.0
        %v2188 = vadd.f32 %v2180, 1.0
        %v2189 = vadd.f32 %v2181, 1.0
        %v2190 = vadd.f32 %v2182, 1.0
        %v2191 = vmul.f32 %v2127, %v2183
        %v2192 = vmul.f32 %v2128, %v2184
        %v2193 = vmul.f32 %v2129, %v2185
        %v2194 = vmul.f32 %v2130, %v2186
        %v2195 = vmul.f32 %v2131, %v2187
        %v2196 = vmul.f32 %v2132, %v2188
        %v2197 = vmul.f32 %v2133, %v2189
        %v2198 = vmul.f32 %v2134, %v2190
        %v2199 = vpack.c.bf16 %v2195, %v2191
        %v2200 = vpack.c.bf16 %v2196, %v2192
        %v2201 = vpack.c.bf16 %v2197, %v2193
        %v2202 = vpack.c.bf16 %v2198, %v2194
        %v2203 = vld [vmem:[#allocation16] sm:$0xf]
        %v2204 = vld [vmem:[#allocation16 + $0x4] sm:$0xf]
        %v2205 = vld [vmem:[#allocation16 + $0x8] sm:$0xf]
        %v2206 = vld [vmem:[#allocation16 + $0xc] sm:$0xf]
        %v2207 = vld [vmem:[#allocation16 + $0x10] sm:$0xf]
        %v2208 = vld [vmem:[#allocation16 + $0x14] sm:$0xf]
        %v2209 = vld [vmem:[#allocation16 + $0x18] sm:$0xf]
        %v2210 = vld [vmem:[#allocation16 + $0x1c] sm:$0xf]
        %v2211 = vld [vmem:[#allocation16 + $0x20] sm:$0xf]
        %v2212 = vld [vmem:[#allocation16 + $0x24] sm:$0xf]
        %v2213 = vld [vmem:[#allocation16 + $0x28] sm:$0xf]
        %v2214 = vld [vmem:[#allocation16 + $0x2c] sm:$0xf]
        %v2215 = vld [vmem:[#allocation16 + $0x30] sm:$0xf]
        %v2216 = vld [vmem:[#allocation16 + $0x34] sm:$0xf]
        %v2217 = vld [vmem:[#allocation16 + $0x38] sm:$0xf]
        %v2218 = vld [vmem:[#allocation16 + $0x3c] sm:$0xf]
        %v2219 = vld [vmem:[#allocation16 + $0x40] sm:$0xf]
        %v2220 = vld [vmem:[#allocation16 + $0x44] sm:$0xf]
        %v2221 = vld [vmem:[#allocation16 + $0x48] sm:$0xf]
        %v2222 = vld [vmem:[#allocation16 + $0x4c] sm:$0xf]
        %v2223 = vld [vmem:[#allocation16 + $0x50] sm:$0xf]
        %v2224 = vld [vmem:[#allocation16 + $0x54] sm:$0xf]
        %v2225 = vld [vmem:[#allocation16 + $0x58] sm:$0xf]
        %v2226 = vld [vmem:[#allocation16 + $0x5c] sm:$0xf]
        %v2227 = vld [vmem:[#allocation16 + $0x60] sm:$0xf]
        %v2228 = vld [vmem:[#allocation16 + $0x64] sm:$0xf]
        %v2229 = vld [vmem:[#allocation16 + $0x68] sm:$0xf]
        %v2230 = vld [vmem:[#allocation16 + $0x6c] sm:$0xf]
        %v2231 = vld [vmem:[#allocation16 + $0x70] sm:$0xf]
        %v2232 = vld [vmem:[#allocation16 + $0x74] sm:$0xf]
        %v2233 = vld [vmem:[#allocation16 + $0x78] sm:$0xf]
        %v2234 = vld [vmem:[#allocation16 + $0x7c] sm:$0xf]
        %v2235 = vld [vmem:[#allocation16 + $0x80] sm:$0xf]
        %v2236 = vld [vmem:[#allocation16 + $0x84] sm:$0xf]
        %v2237 = vld [vmem:[#allocation16 + $0x88] sm:$0xf]
        %v2238 = vld [vmem:[#allocation16 + $0x8c] sm:$0xf]
        %v2239 = vld [vmem:[#allocation16 + $0x90] sm:$0xf]
        %v2240 = vld [vmem:[#allocation16 + $0x94] sm:$0xf]
        %v2241 = vld [vmem:[#allocation16 + $0x98] sm:$0xf]
        %v2242 = vld [vmem:[#allocation16 + $0x9c] sm:$0xf]
        %v2243 = vld [vmem:[#allocation16 + $0xa0] sm:$0xf]
        %v2244 = vld [vmem:[#allocation16 + $0xa4] sm:$0xf]
        %v2245 = vld [vmem:[#allocation16 + $0xa8] sm:$0xf]
        %v2246 = vld [vmem:[#allocation16 + $0xac] sm:$0xf]
        %v2247 = vld [vmem:[#allocation16 + $0xb0] sm:$0xf]
        %v2248 = vld [vmem:[#allocation16 + $0xb4] sm:$0xf]
        %v2249 = vld [vmem:[#allocation16 + $0xb8] sm:$0xf]
        %v2250 = vld [vmem:[#allocation16 + $0xbc] sm:$0xf]
        %v2251 = vld [vmem:[#allocation16 + $0xc0] sm:$0xf]
        %v2252 = vld [vmem:[#allocation16 + $0xc4] sm:$0xf]
        %v2253 = vld [vmem:[#allocation16 + $0xc8] sm:$0xf]
        %v2254 = vld [vmem:[#allocation16 + $0xcc] sm:$0xf]
        %v2255 = vld [vmem:[#allocation16 + $0xd0] sm:$0xf]
        %v2256 = vld [vmem:[#allocation16 + $0xd4] sm:$0xf]
        %v2257 = vld [vmem:[#allocation16 + $0xd8] sm:$0xf]
        %v2258 = vld [vmem:[#allocation16 + $0xdc] sm:$0xf]
        %v2259 = vld [vmem:[#allocation16 + $0xe0] sm:$0xf]
        %v2260 = vld [vmem:[#allocation16 + $0xe4] sm:$0xf]
        %v2261 = vld [vmem:[#allocation16 + $0xe8] sm:$0xf]
        %v2262 = vld [vmem:[#allocation16 + $0xec] sm:$0xf]
        %v2263 = vld [vmem:[#allocation16 + $0xf0] sm:$0xf]
        %v2264 = vld [vmem:[#allocation16 + $0xf4] sm:$0xf]
        %v2265 = vld [vmem:[#allocation16 + $0xf8] sm:$0xf]
        %v2266 = vld [vmem:[#allocation16 + $0xfc] sm:$0xf]
        %v2267 = vld [vmem:[%s14] sm:$0x1]
        %v2269 = vlaneseq
        %v2270 = vshrl.u32 %v2269, 7
        %v2271 = vsub.s32 0, %v2270
        %v2272 = vrot.slane %v2267, %v2271
        %v2338 = vunpack.c.l.b16 %v2203
        %v2339 = vunpack.c.l.b16 %v2204
        %v2340 = vunpack.c.l.b16 %v2205
        %v2341 = vunpack.c.l.b16 %v2206
        %v2342 = vunpack.c.l.b16 %v2207
        %v2343 = vunpack.c.l.b16 %v2208
        %v2344 = vunpack.c.l.b16 %v2209
        %v2345 = vunpack.c.l.b16 %v2210
        %v2346 = vunpack.c.l.b16 %v2211
        %v2347 = vunpack.c.l.b16 %v2212
        %v2348 = vunpack.c.l.b16 %v2213
        %v2349 = vunpack.c.l.b16 %v2214
        %v2350 = vunpack.c.l.b16 %v2215
        %v2351 = vunpack.c.l.b16 %v2216
        %v2352 = vunpack.c.l.b16 %v2217
        %v2353 = vunpack.c.l.b16 %v2218
        %v2354 = vunpack.c.l.b16 %v2219
        %v2355 = vunpack.c.l.b16 %v2220
        %v2356 = vunpack.c.l.b16 %v2221
        %v2357 = vunpack.c.l.b16 %v2222
        %v2358 = vunpack.c.l.b16 %v2223
        %v2359 = vunpack.c.l.b16 %v2224
        %v2360 = vunpack.c.l.b16 %v2225
        %v2361 = vunpack.c.l.b16 %v2226
        %v2362 = vunpack.c.l.b16 %v2227
        %v2363 = vunpack.c.l.b16 %v2228
        %v2364 = vunpack.c.l.b16 %v2229
        %v2365 = vunpack.c.l.b16 %v2230
        %v2366 = vunpack.c.l.b16 %v2231
        %v2367 = vunpack.c.l.b16 %v2232
        %v2368 = vunpack.c.l.b16 %v2233
        %v2369 = vunpack.c.l.b16 %v2234
        %v2370 = vunpack.c.l.b16 %v2235
        %v2371 = vunpack.c.l.b16 %v2236
        %v2372 = vunpack.c.l.b16 %v2237
        %v2373 = vunpack.c.l.b16 %v2238
        %v2374 = vunpack.c.l.b16 %v2239
        %v2375 = vunpack.c.l.b16 %v2240
        %v2376 = vunpack.c.l.b16 %v2241
        %v2377 = vunpack.c.l.b16 %v2242
        %v2378 = vunpack.c.l.b16 %v2243
        %v2379 = vunpack.c.l.b16 %v2244
        %v2380 = vunpack.c.l.b16 %v2245
        %v2381 = vunpack.c.l.b16 %v2246
        %v2382 = vunpack.c.l.b16 %v2247
        %v2383 = vunpack.c.l.b16 %v2248
        %v2384 = vunpack.c.l.b16 %v2249
        %v2385 = vunpack.c.l.b16 %v2250
        %v2386 = vunpack.c.l.b16 %v2251
        %v2387 = vunpack.c.l.b16 %v2252
        %v2388 = vunpack.c.l.b16 %v2253
        %v2389 = vunpack.c.l.b16 %v2254
        %v2390 = vunpack.c.l.b16 %v2255
        %v2391 = vunpack.c.l.b16 %v2256
        %v2392 = vunpack.c.l.b16 %v2257
        %v2393 = vunpack.c.l.b16 %v2258
        %v2394 = vunpack.c.l.b16 %v2259
        %v2395 = vunpack.c.l.b16 %v2260
        %v2396 = vunpack.c.l.b16 %v2261
        %v2397 = vunpack.c.l.b16 %v2262
        %v2398 = vunpack.c.l.b16 %v2263
        %v2399 = vunpack.c.l.b16 %v2264
        %v2400 = vunpack.c.l.b16 %v2265
        %v2401 = vunpack.c.l.b16 %v2266
        %v2402 = vpack.c.b16 %v2339, %v2338
        %v2403 = vpack.c.b16 %v2341, %v2340
        %v2404 = vpack.c.b16 %v2343, %v2342
        %v2405 = vpack.c.b16 %v2345, %v2344
        %v2406 = vpack.c.b16 %v2347, %v2346
        %v2407 = vpack.c.b16 %v2349, %v2348
        %v2408 = vpack.c.b16 %v2351, %v2350
        %v2409 = vpack.c.b16 %v2353, %v2352
        %v2410 = vpack.c.b16 %v2355, %v2354
        %v2411 = vpack.c.b16 %v2357, %v2356
        %v2412 = vpack.c.b16 %v2359, %v2358
        %v2413 = vpack.c.b16 %v2361, %v2360
        %v2414 = vpack.c.b16 %v2363, %v2362
        %v2415 = vpack.c.b16 %v2365, %v2364
        %v2416 = vpack.c.b16 %v2367, %v2366
        %v2417 = vpack.c.b16 %v2369, %v2368
        %v2418 = vpack.c.b16 %v2371, %v2370
        %v2419 = vpack.c.b16 %v2373, %v2372
        %v2420 = vpack.c.b16 %v2375, %v2374
        %v2421 = vpack.c.b16 %v2377, %v2376
        %v2422 = vpack.c.b16 %v2379, %v2378
        %v2423 = vpack.c.b16 %v2381, %v2380
        %v2424 = vpack.c.b16 %v2383, %v2382
        %v2425 = vpack.c.b16 %v2385, %v2384
        %v2426 = vpack.c.b16 %v2387, %v2386
        %v2427 = vpack.c.b16 %v2389, %v2388
        %v2428 = vpack.c.b16 %v2391, %v2390
        %v2429 = vpack.c.b16 %v2393, %v2392
        %v2430 = vpack.c.b16 %v2395, %v2394
        %v2431 = vpack.c.b16 %v2397, %v2396
        %v2432 = vpack.c.b16 %v2399, %v2398
        %v2433 = vpack.c.b16 %v2401, %v2400
        %2466 = vmatprep.subr.bf16.mxu0 0
        %2467 = vmatpush1.bf16.msra.mxu0 %v2409
        %2468 = vmatprep.subr.bf16.mxu0 0
        %2469 = vmatpush1.bf16.msra.mxu0 %v2408
        %2470 = vmatprep.subr.bf16.mxu0 0
        %2471 = vmatpush1.bf16.msra.mxu0 %v2407
        %2472 = vmatprep.subr.bf16.mxu0 0
        %2473 = vmatpush1.bf16.msra.mxu0 %v2406
        %2474 = vmatprep.subr.bf16.mxu0 0
        %2475 = vmatpush1.bf16.msra.mxu0 %v2405
        %2476 = vmatprep.subr.bf16.mxu0 0
        %2477 = vmatpush1.bf16.msra.mxu0 %v2404
        %2478 = vmatprep.subr.bf16.mxu0 0
        %2479 = vmatpush1.bf16.msra.mxu0 %v2403
        %2480 = vmatprep.subr.bf16.mxu0 0
        %2481 = vmatpush1.bf16.msra.mxu0 %v2402
        %2482 = vmatprep.subr.bf16.mxu0 0
        %2483 = vmatpush2.bf16.msra.mxu0 %v2417
        %2484 = vmatprep.subr.bf16.mxu0 0
        %2485 = vmatpush2.bf16.msra.mxu0 %v2416
        %2486 = vmatprep.subr.bf16.mxu0 0
        %2487 = vmatpush2.bf16.msra.mxu0 %v2415
        %2488 = vmatprep.subr.bf16.mxu0 0
        %2489 = vmatpush2.bf16.msra.mxu0 %v2414
        %2490 = vmatprep.subr.bf16.mxu0 0
        %2491 = vmatpush2.bf16.msra.mxu0 %v2413
        %2492 = vmatprep.subr.bf16.mxu0 0
        %2493 = vmatpush2.bf16.msra.mxu0 %v2412
        %2494 = vmatprep.subr.bf16.mxu0 0
        %2495 = vmatpush2.bf16.msra.mxu0 %v2411
        %2496 = vmatprep.subr.bf16.mxu0 0
        %2497 = vmatpush2.bf16.msra.mxu0 %v2410
        %2498 = vmatprep.mubr.bf16.mxu0 %v2200
        %2499 = vmatmul.mubr.bf16.gmra.mxu0 %v2199
        %v2500 = vpop.f32.mrf.mxu0
        %v2501 = vadd.f32 %v2272, %v2500
        %v2502 = vpop.f32.mrf.mxu0
        %v2503 = vpop.f32.mrf.mxu0
        %v2504 = vadd.f32 %v2272, %v2503
        %v2505 = vpop.f32.mrf.mxu0
        %2506 = vdwg.mxu0
        %2507 = vmatprep.subr.bf16.mxu0 0
        %2508 = vmatpush1.bf16.msra.mxu0 %v2425
        %2509 = vmatprep.subr.bf16.mxu0 0
        %2510 = vmatpush1.bf16.msra.mxu0 %v2424
        %2511 = vmatprep.subr.bf16.mxu0 0
        %2512 = vmatpush1.bf16.msra.mxu0 %v2423
        %2513 = vmatprep.subr.bf16.mxu0 0
        %2514 = vmatpush1.bf16.msra.mxu0 %v2422
        %2515 = vmatprep.subr.bf16.mxu0 0
        %2516 = vmatpush1.bf16.msra.mxu0 %v2421
        %2517 = vmatprep.subr.bf16.mxu0 0
        %2518 = vmatpush1.bf16.msra.mxu0 %v2420
        %2519 = vmatprep.subr.bf16.mxu0 0
        %2520 = vmatpush1.bf16.msra.mxu0 %v2419
        %2521 = vmatprep.subr.bf16.mxu0 0
        %2522 = vmatpush1.bf16.msra.mxu0 %v2418
        %2523 = vmatprep.subr.bf16.mxu0 0
        %2524 = vmatpush2.bf16.msra.mxu0 %v2433
        %2525 = vmatprep.subr.bf16.mxu0 0
        %2526 = vmatpush2.bf16.msra.mxu0 %v2432
        %2527 = vmatprep.subr.bf16.mxu0 0
        %2528 = vmatpush2.bf16.msra.mxu0 %v2431
        %2529 = vmatprep.subr.bf16.mxu0 0
        %2530 = vmatpush2.bf16.msra.mxu0 %v2430
        %2531 = vmatprep.subr.bf16.mxu0 0
        %2532 = vmatpush2.bf16.msra.mxu0 %v2429
        %2533 = vmatprep.subr.bf16.mxu0 0
        %2534 = vmatpush2.bf16.msra.mxu0 %v2428
        %2535 = vmatprep.subr.bf16.mxu0 0
        %2536 = vmatpush2.bf16.msra.mxu0 %v2427
        %2537 = vmatprep.subr.bf16.mxu0 0
        %2538 = vmatpush2.bf16.msra.mxu0 %v2426
        %2539 = vmatprep.mubr.bf16.mxu0 %v2202
        %2540 = vmatmul.mubr.bf16.gmra.mxu0 %v2201
        %v2541 = vpop.f32.mrf.mxu0
        %v2542 = vadd.f32 %v2501, %v2541
        %v2543 = vpop.f32.mrf.mxu0
        %v2544 = vpop.f32.mrf.mxu0
        %v2545 = vadd.f32 %v2504, %v2544
        %v2546 = vpop.f32.mrf.mxu0
        %2547 = vdwg.mxu0
        %v2548 = vadd.f32 %v1784, %v2542
        %v2549 = vadd.f32 %v1785, %v2545
        %v2550 = vld [vmem:[%s15] sm:$0x1]
        %v2551 = vld [vmem:[%s16] sm:$0x1]
        %2552 = vadd.xlane.f32.xlu0 %v2548
        %v2553 = vpop.xlane.xlu0 %2552
        %2554 = vadd.xlane.f32.xlu0 %v2549
        %v2555 = vpop.xlane.xlu0 %2554
        %v2556 = vmul.f32 %v2553, %v804
        %v2557 = vmul.f32 %v2555, %v804
        %v2558 = vsub.f32 %v2548, %v2556
        %v2559 = vsub.f32 %v2549, %v2557
        %v2560 = vmul.f32 %v2558, %v2558
        %v2561 = vmul.f32 %v2559, %v2559
        %2562 = vadd.xlane.f32.xlu0 %v2560
        %v2563 = vpop.xlane.xlu0 %2562
        %2564 = vadd.xlane.f32.xlu0 %v2561
        %v2565 = vpop.xlane.xlu0 %2564
        %v2566 = vmul.f32 %v2563, %v804
        %v2567 = vmul.f32 %v2565, %v804
        %v2568 = vadd.f32 %v2566, 1e-05
        %v2569 = vadd.f32 %v2567, 1e-05
        %v2570 = vrsqrt.pop %v2568
        %v2571 = vrsqrt.pop %v2569
        %v2572 = vmul.f32 %v2558, %v2570
        %v2573 = vmul.f32 %v2559, %v2571
        %v2575 = vlaneseq
        %v2576 = vshrl.u32 %v2575, 7
        %v2577 = vsub.s32 0, %v2576
        %v2578 = vrot.slane %v2550, %v2577
        %v2580 = vmul.f32 %v2572, %v2578
        %v2581 = vmul.f32 %v2573, %v2578
        %v2583 = vlaneseq
        %v2584 = vshrl.u32 %v2583, 7
        %v2585 = vsub.s32 0, %v2584
        %v2586 = vrot.slane %v2551, %v2585
        %v2588 = vadd.f32 %v2580, %v2586
        %v2589 = vadd.f32 %v2581, %v2586
        %2590 = vst [vmem:[%s676] sm:$0xff] %v2588
        %2591 = vst [vmem:[%s676 + $0x8] sm:$0xff] %v2589
        %s2592 = sand.u32 %s408, 1
        %s2593 = scalar_lea.sflag [#allocation4], %s2592
        %s2594 = sand.u32 %s408, 1
        %s2595 = smul.addr %s2594, 16
        %s2596 = scalar_lea.vmem [#allocation17], %s2595
        // Predicated region
        $region125: #{tpu_custom_call.1} parent=87 // pred_check
          %p2597 = pneg %p418
        $region126: #{tpu_custom_call.1} parent=87 // pred_check_branch
          %2599 = sbr.rel (%p2597) target = $region128
        $region127: #{tpu_custom_call.1} parent=87 // pred_region
          %s2601 = ssub.s32 256, 256
          %2602 = vsyncadd %s2593, %s2601
          %s2603 = smul.addr %s38, 2
          %s2604 = smul.addr %s2603, 128
          %s2605 = scalar_lea.hbm %s17, %s2604
          %s2606 = sshll.u32 %s2596, 4
          %s2607 = int_to_ptr.vmem [resolvable:$true] %s2606
          %2612 = dma.vmem_to_hbm [thread:$0]  %s2607, 256, %s2605, %s2593, 128, 128, 8
        $region128: #{tpu_custom_call.1} parent=87 // pred_fallthru
          _
      $region88: #{tpu_custom_call.1} parent=5 // pred_fallthru
        _
      %p2613 = scmp.le.s32.totalorder 2, %s33
      // Predicated region
      $region129: #{tpu_custom_call.1} parent=5 // pred_check
        %p2614 = pneg %p2613
      $region130: #{tpu_custom_call.1} parent=5 // pred_check_branch
        %2616 = sbr.rel (%p2614) target = $region132
      $region131: #{tpu_custom_call.1} parent=5 // pred_region
        %s2617 = ssub.s32 %s33, 2
        // Predicated region
        $region133: #{tpu_custom_call.1} parent=131 // pred_check
          %p2618 = pneg %p424
        $region134: #{tpu_custom_call.1} parent=131 // pred_check_branch
          %2620 = sbr.rel (%p2618) target = $region136
        $region135: #{tpu_custom_call.1} parent=131 // pred_region
          %s2621 = sand.u32 %s409, 1
          %s2622 = scalar_lea.sflag [#allocation4], %s2621
          %s2623 = sand.u32 %s409, 1
          %s2624 = smul.addr %s2623, 16
          %s2625 = scalar_lea.vmem [#allocation17], %s2624
          %2626 = dma.done %s2622, 256
        $region136: #{tpu_custom_call.1} parent=131 // pred_fallthru
          _
      $region132: #{tpu_custom_call.1} parent=5 // pred_fallthru
        _
    $region6: #{tpu_custom_call.1} parent=1 // loop_footer
      %s37 = sadd.s32 1, %s33
    $region7: #{tpu_custom_call.1} parent=1 // loop_footer_branch
      %32 = sbr.rel target = $region3
    $region8: #{tpu_custom_call.1} parent=1 // loop_exit
      _
    %2627 = vsyncpa [#allocation3], 1
    %s2628 = scalar_lea.sflag [#allocation3], 1
    %2629 = vsyncpa %s2628, 1
    %2630 = vsyncpa [#allocation6], 1
    %2631 = vsyncpa [#allocation9], 1
    %2632 = vsyncpa [#allocation12], 1
    %2633 = vsyncpa [#allocation15], 1
    %2634 = vsyncpa [#allocation4], 1
    %s2635 = scalar_lea.sflag [#allocation4], 1
    %2636 = vsyncpa %s2635, 1

</llo_original>
